<compile_context>
chip_gen: v5e
topology: v5e:2x2
jax: 0.10.0
libtpu: 0.0.40
codegen_flags: <defaults>
</compile_context>

<pallas_src>
import jax
import jax.numpy as jnp
from jax.experimental import pallas as pl
from jax.experimental.pallas import tpu as pltpu

H1 = 1024
H2 = 512


def _round_up(x, m):
    return ((x + m - 1) // m) * m


def _cdiv(a, b):
    return -(-a // b)


def _num_tensorcores(default=1):
    """Best-effort TensorCore-per-chip detection (2 on v7x, 1 on v5e/v6e).

    Falls back to `default` (1) if the attribute is unavailable, which matches the
    recommended behaviour on 1-TC chips.  Override via num_tensorcores= if needed.
    """
    try:
        d = jax.devices()[0]
        for attr in ("num_cores", "core_count"):
            v = getattr(d, attr, None)
            if isinstance(v, int) and v > 0:
                return min(v, 2)
    except Exception:
        pass
    return default


def _make_kernel(h1_chunk, precision):
    """Fused 3-layer MLP kernel, one grid step per batch tile.

    Weights/biases are grid-invariant VMEM residents.  x is cast to the weight dtype
    (bf16 by default) in-kernel so every matmul runs at the MXU's bf16 rate while
    accumulation and the bias/ReLU epilogue stay in f32 (v5e-safe VPU path).

    If h1_chunk is not None, the (tb, H1) fc1 intermediate is streamed in
    h1_chunk-column slabs that are immediately contracted into an f32 h2 accumulator,
    avoiding the VMEM round-trip of the full h1 (store-slot relief on v6e/v7x).
    """
    def kernel(x_ref, w1_ref, b1_ref, w2_ref, b2_ref, w3_ref, b3_ref, o_ref):
        cdt = w1_ref.dtype
        x = x_ref[...].astype(cdt)

        if h1_chunk is None:
            h1 = jnp.dot(x, w1_ref[...], precision=precision,
                         preferred_element_type=jnp.float32)
            h1 = jnp.maximum(h1 + b1_ref[...], 0.0).astype(cdt)
            h2 = jnp.dot(h1, w2_ref[...], precision=precision,
                         preferred_element_type=jnp.float32)
        else:
            n_chunks = w1_ref.shape[1] // h1_chunk
            h2 = None
            for c in range(n_chunks):          # static, short trip-count
                lo = c * h1_chunk
                hi = lo + h1_chunk
                h1_c = jnp.dot(x, w1_ref[:, lo:hi], precision=precision,
                               preferred_element_type=jnp.float32)
                h1_c = jnp.maximum(h1_c + b1_ref[:, lo:hi], 0.0).astype(cdt)
                part = jnp.dot(h1_c, w2_ref[lo:hi, :], precision=precision,
                               preferred_element_type=jnp.float32)
                h2 = part if h2 is None else h2 + part

        h2 = jnp.maximum(h2 + b2_ref[...], 0.0).astype(w3_ref.dtype)
        h3 = jnp.dot(h2, w3_ref[...], precision=precision,
                     preferred_element_type=jnp.float32)
        o_ref[...] = jnp.maximum(h3 + b3_ref[...], 0.0).astype(o_ref.dtype)

    return kernel


def prepare_params(raw_params, compute_dtype=jnp.bfloat16):
    """One-time parameter prep (hoisted out of the per-call forward path).

    Casts weights to the MXU compute dtype, keeps biases in f32 for the epilogue, and
    pads the last layer to a multiple of 128 output lanes so the final matmul fills
    the MXU N dimension and the output store is lane-dense (unmasked vst).
    """
    out_features = raw_params["w3"].shape[1]
    n_pad = _round_up(out_features, 128)
    pad_n = n_pad - out_features
    return {
        "w1": raw_params["w1"].astype(compute_dtype),
        "b1": raw_params["b1"].astype(jnp.float32),
        "w2": raw_params["w2"].astype(compute_dtype),
        "b2": raw_params["b2"].astype(jnp.float32),
        "w3": jnp.pad(raw_params["w3"], ((0, 0), (0, pad_n))).astype(compute_dtype),
        "b3": jnp.pad(raw_params["b3"], ((0, 0), (0, pad_n))).astype(jnp.float32),
        "out_features": out_features,   # python int, used only in the wrapper
    }


def weight_mult_inverse_forward(x, params, *, max_tile=512, num_tensorcores=None,
                                out_dtype=None, return_padded=False,
                                h1_chunk="auto", precision=None):
    """x: (B, in_features).  params: output of prepare_params() (pre-cast / pre-padded).

    out_dtype: output dtype (defaults to x.dtype); pass jnp.bfloat16 to halve output
    writeback bytes.  return_padded=True skips the final (B, out_features) slice and
    returns the padded (b_pad, 128k) slab.
    """
    B, in_features = x.shape
    n_pad = params["w3"].shape[1]
    out_features = params.get("out_features", n_pad)
    out_dtype = x.dtype if out_dtype is None else out_dtype

    # ---- batch tiling: balanced tiles, multiple of 16 rows, cap at max_tile.
    # Only force >= 2 tiles when the chip actually has 2 TensorCores (v7x).
    if num_tensorcores is None:
        num_tensorcores = _num_tensorcores()
    min_tiles = num_tensorcores if B > 16 * num_tensorcores else 1
    n_tiles = max(min_tiles, _cdiv(B, max_tile))
    tb = min(_round_up(_cdiv(B, n_tiles), 16), _round_up(B, 16))
    n_tiles = _cdiv(B, tb)
    b_pad = n_tiles * tb

    xp = x if b_pad == B else jnp.pad(x, ((0, b_pad - B), (0, 0)))

    # Stream the fc1 intermediate only for large tiles (where it would spill VMEM).
    if h1_chunk == "auto":
        h1_chunk = 256 if tb >= 256 else None
    if h1_chunk is not None and params["w1"].shape[1] % h1_chunk != 0:
        h1_chunk = None

    # Grid-invariant operands: whole array resident in VMEM for the entire call
    # (no per-step re-DMA, no double-buffer copies of the weights).
    resident = pl.BlockSpec(memory_space=pltpu.MemorySpace.VMEM)

    out = pl.pallas_call(
        _make_kernel(h1_chunk, precision),
        out_shape=jax.ShapeDtypeStruct((b_pad, n_pad), out_dtype),
        grid_spec=pltpu.PrefetchScalarGridSpec(
            num_scalar_prefetch=0,
            grid=(n_tiles,),
            in_specs=[
                pl.BlockSpec((tb, in_features), lambda i: (i, 0)),  # x tile (pipelined)
                resident, resident,                                  # w1, b1
                resident, resident,                                  # w2, b2
                resident, resident,                                  # w3, b3 (128-lane padded)
            ],
            out_specs=pl.BlockSpec((tb, n_pad), lambda i: (i, 0)),
        ),
        compiler_params=pltpu.CompilerParams(
            # no-op on 1-TC v5e/v6e, shards batch tiles across TCs on v7x
            dimension_semantics=("parallel",),
        ),
    )(xp, params["w1"], params["b1"], params["w2"], params["b2"],
      params["w3"], params["b3"])

    if return_padded:
        return out
    # Padded rows hold relu(bias) != 0; keep this slice (or mask) if ever removed.
    return out[:B, :out_features]


def init_params(key, in_features, out_features):
    """Deterministic init mimicking nn.Linear's uniform(-1/sqrt(fan_in), +). f32 masters,
    stored pre-transposed as (fan_in, fan_out)."""
    def linear(k, fan_in, fan_out):
        kw, kb = jax.random.split(k)
        bound = 1.0 / jnp.sqrt(fan_in)
        w = jax.random.uniform(kw, (fan_in, fan_out), jnp.float32, -bound, bound)
        b = jax.random.uniform(kb, (1, fan_out), jnp.float32, -bound, bound)
        return w, b

    k1, k2, k3 = jax.random.split(key, 3)
    w1, b1 = linear(k1, in_features, H1)
    w2, b2 = linear(k2, H1, H2)
    w3, b3 = linear(k3, H2, out_features)
    return {"w1": w1, "b1": b1, "w2": w2, "b2": b2, "w3": w3, "b3": b3}


def reference_forward(x, raw_params, compute_dtype=jnp.bfloat16, precision=None):
    """Pure-JAX reference mirroring the kernel's numeric path (same dtype casts)."""
    cd = compute_dtype

    def layer(h, w, b):
        y = jnp.dot(h.astype(cd), w.astype(cd), precision=precision,
                    preferred_element_type=jnp.float32) + b
        return jnp.maximum(y, 0.0)

    h = layer(x, raw_params["w1"], raw_params["b1"])
    h = layer(h, raw_params["w2"], raw_params["b2"])
    return layer(h, raw_params["w3"], raw_params["b3"])


if __name__ == "__main__":
    in_features = 32
    out_features = 64

    key = jax.random.PRNGKey(0)
    kx, kx2, kp = jax.random.split(key, 3)
    raw = init_params(kp, in_features, out_features)

    # One-time prep (bf16 MXU path) — this is the part hoisted out of forward().
    params_bf16 = prepare_params(raw, jnp.bfloat16)

    # --- small batch: monolithic in-kernel path ---
    batch = 16
    x = jax.random.normal(kx, (batch, in_features), jnp.float32)
    out = jax.block_until_ready(weight_mult_inverse_forward(x, params_bf16))
    ref = reference_forward(x, raw, jnp.bfloat16)
    assert out.shape == (batch, out_features)
    assert jnp.allclose(out, ref, atol=5e-3, rtol=5e-3), "mismatch vs bf16 reference (B=16)"

    # --- larger batch: exercises the streamed-h1 (chunked) path, single balanced tile ---
    batch2 = 320
    x2 = jax.random.normal(kx2, (batch2, in_features), jnp.float32)
    out2 = jax.block_until_ready(weight_mult_inverse_forward(x2, params_bf16))
    ref2 = reference_forward(x2, raw, jnp.bfloat16)
    assert out2.shape == (batch2, out_features)
    assert jnp.allclose(out2, ref2, atol=5e-3, rtol=5e-3), "mismatch vs bf16 reference (B=320)"

    # --- f32 validation path (same default-precision lowering in kernel and reference) ---
    params_f32 = prepare_params(raw, jnp.float32)
    out_f32 = jax.block_until_ready(weight_mult_inverse_forward(x, params_f32))
    ref_f32 = reference_forward(x, raw, jnp.float32)
    assert jnp.allclose(out_f32, ref_f32, atol=1e-4, rtol=1e-4), "mismatch vs f32 reference"

    print("KERNEL_OK")
</pallas_src>

<mosaic_0001>
module attributes {stable_mosaic.version = 11 : i64} {
  func.func @kernel(%arg0: i32, %arg1: memref<16x32xf32, #tpu.memory_space<vmem>>, %arg2: memref<32x1024xbf16, #tpu.memory_space<vmem>>, %arg3: memref<1x1024xf32, #tpu.memory_space<vmem>>, %arg4: memref<1024x512xbf16, #tpu.memory_space<vmem>>, %arg5: memref<1x512xf32, #tpu.memory_space<vmem>>, %arg6: memref<512x128xbf16, #tpu.memory_space<vmem>>, %arg7: memref<1x128xf32, #tpu.memory_space<vmem>>, %arg8: memref<16x128xf32, #tpu.memory_space<vmem>>) attributes {dimension_semantics = [#tpu.dimension_semantics<parallel>], iteration_bounds = array<i64: 1>, scalar_prefetch = 0 : i64, scratch_operands = 0 : i64, tpu.core_type = #tpu.core_type<tc>, window_params = [{transform_indices = @transform_0, window_bounds = array<i64: 16, 32>}, {pipeline_mode = #tpu.pipeline_mode<synchronous>, transform_indices = @transform_1, window_bounds = array<i64: 32, 1024>}, {pipeline_mode = #tpu.pipeline_mode<synchronous>, transform_indices = @transform_2, window_bounds = array<i64: 1, 1024>}, {pipeline_mode = #tpu.pipeline_mode<synchronous>, transform_indices = @transform_3, window_bounds = array<i64: 1024, 512>}, {pipeline_mode = #tpu.pipeline_mode<synchronous>, transform_indices = @transform_4, window_bounds = array<i64: 1, 512>}, {pipeline_mode = #tpu.pipeline_mode<synchronous>, transform_indices = @transform_5, window_bounds = array<i64: 512, 128>}, {pipeline_mode = #tpu.pipeline_mode<synchronous>, transform_indices = @transform_6, window_bounds = array<i64: 1, 128>}, {transform_indices = @transform_7, window_bounds = array<i64: 16, 128>}]} {
    %c0 = arith.constant 0 : index
    %c0_0 = arith.constant 0 : index
    %0 = vector.load %arg1[%c0, %c0_0] : memref<16x32xf32, #tpu.memory_space<vmem>>, vector<16x32xf32>
    %1 = arith.truncf %0 : vector<16x32xf32> to vector<16x32xbf16>
    %c0_1 = arith.constant 0 : index
    %c0_2 = arith.constant 0 : index
    %2 = vector.load %arg2[%c0_1, %c0_2] : memref<32x1024xbf16, #tpu.memory_space<vmem>>, vector<32x1024xbf16>
    %cst = arith.constant dense<0.000000e+00> : vector<16x1024xf32>
    %3 = tpu.matmul %1, %2, %cst {dimension_numbers = #tpu.dot_dimension_numbers<[1], [0], [0], [1], [0, 0, 1, 1], [], []>} : vector<16x32xbf16>, vector<32x1024xbf16>, vector<16x1024xf32> -> vector<16x1024xf32>
    %c0_3 = arith.constant 0 : index
    %c0_4 = arith.constant 0 : index
    %4 = vector.load %arg3[%c0_3, %c0_4] : memref<1x1024xf32, #tpu.memory_space<vmem>>, vector<1x1024xf32>
    %5 = vector.broadcast %4 : vector<1x1024xf32> to vector<16x1024xf32>
    %6 = arith.addf %3, %5 : vector<16x1024xf32>
    %cst_5 = arith.constant 0.000000e+00 : f32
    %7 = vector.broadcast %cst_5 : f32 to vector<16x1024xf32>
    %8 = arith.maximumf %6, %7 : vector<16x1024xf32>
    %9 = arith.truncf %8 : vector<16x1024xf32> to vector<16x1024xbf16>
    %c0_6 = arith.constant 0 : index
    %c0_7 = arith.constant 0 : index
    %10 = vector.load %arg4[%c0_6, %c0_7] : memref<1024x512xbf16, #tpu.memory_space<vmem>>, vector<1024x512xbf16>
    %cst_8 = arith.constant dense<0.000000e+00> : vector<16x512xf32>
    %11 = tpu.matmul %9, %10, %cst_8 {dimension_numbers = #tpu.dot_dimension_numbers<[1], [0], [0], [1], [0, 0, 1, 1], [], []>} : vector<16x1024xbf16>, vector<1024x512xbf16>, vector<16x512xf32> -> vector<16x512xf32>
    %c0_9 = arith.constant 0 : index
    %c0_10 = arith.constant 0 : index
    %12 = vector.load %arg5[%c0_9, %c0_10] : memref<1x512xf32, #tpu.memory_space<vmem>>, vector<1x512xf32>
    %13 = vector.broadcast %12 : vector<1x512xf32> to vector<16x512xf32>
    %14 = arith.addf %11, %13 : vector<16x512xf32>
    %cst_11 = arith.constant 0.000000e+00 : f32
    %15 = vector.broadcast %cst_11 : f32 to vector<16x512xf32>
    %16 = arith.maximumf %14, %15 : vector<16x512xf32>
    %17 = arith.truncf %16 : vector<16x512xf32> to vector<16x512xbf16>
    %c0_12 = arith.constant 0 : index
    %c0_13 = arith.constant 0 : index
    %18 = vector.load %arg6[%c0_12, %c0_13] : memref<512x128xbf16, #tpu.memory_space<vmem>>, vector<512x128xbf16>
    %cst_14 = arith.constant dense<0.000000e+00> : vector<16x128xf32>
    %19 = tpu.matmul %17, %18, %cst_14 {dimension_numbers = #tpu.dot_dimension_numbers<[1], [0], [0], [1], [0, 0, 1, 1], [], []>} : vector<16x512xbf16>, vector<512x128xbf16>, vector<16x128xf32> -> vector<16x128xf32>
    %c0_15 = arith.constant 0 : index
    %c0_16 = arith.constant 0 : index
    %20 = vector.load %arg7[%c0_15, %c0_16] : memref<1x128xf32, #tpu.memory_space<vmem>>, vector<1x128xf32>
    %21 = vector.broadcast %20 : vector<1x128xf32> to vector<16x128xf32>
    %22 = arith.addf %19, %21 : vector<16x128xf32>
    %cst_17 = arith.constant 0.000000e+00 : f32
    %23 = vector.broadcast %cst_17 : f32 to vector<16x128xf32>
    %24 = arith.maximumf %22, %23 : vector<16x128xf32>
    %c0_18 = arith.constant 0 : index
    %c0_19 = arith.constant 0 : index
    %25 = vector.load %arg8[%c0_18, %c0_19] : memref<16x128xf32, #tpu.memory_space<vmem>>, vector<16x128xf32>
    tpu.vector_store %arg8[%c0_18, %c0_19], %24 {strides = array<i32>} : memref<16x128xf32, #tpu.memory_space<vmem>>, vector<16x128xf32>,
    return
  }
  func.func @transform_0(%arg0: i32) -> (i32, i32) {
    %c0_i32 = arith.constant 0 : i32
    %c0_i32_0 = arith.constant 0 : i32
    return %arg0, %c0_i32 : i32, i32
  }
  func.func @transform_1(%arg0: i32) -> (i32, i32) {
    %c0_i32 = arith.constant 0 : i32
    %c0_i32_0 = arith.constant 0 : i32
    %c0_i32_1 = arith.constant 0 : i32
    return %c0_i32, %c0_i32_0 : i32, i32
  }
  func.func @transform_2(%arg0: i32) -> (i32, i32) {
    %c0_i32 = arith.constant 0 : i32
    %c0_i32_0 = arith.constant 0 : i32
    %c0_i32_1 = arith.constant 0 : i32
    return %c0_i32, %c0_i32_0 : i32, i32
  }
  func.func @transform_3(%arg0: i32) -> (i32, i32) {
    %c0_i32 = arith.constant 0 : i32
    %c0_i32_0 = arith.constant 0 : i32
    %c0_i32_1 = arith.constant 0 : i32
    return %c0_i32, %c0_i32_0 : i32, i32
  }
  func.func @transform_4(%arg0: i32) -> (i32, i32) {
    %c0_i32 = arith.constant 0 : i32
    %c0_i32_0 = arith.constant 0 : i32
    %c0_i32_1 = arith.constant 0 : i32
    return %c0_i32, %c0_i32_0 : i32, i32
  }
  func.func @transform_5(%arg0: i32) -> (i32, i32) {
    %c0_i32 = arith.constant 0 : i32
    %c0_i32_0 = arith.constant 0 : i32
    %c0_i32_1 = arith.constant 0 : i32
    return %c0_i32, %c0_i32_0 : i32, i32
  }
  func.func @transform_6(%arg0: i32) -> (i32, i32) {
    %c0_i32 = arith.constant 0 : i32
    %c0_i32_0 = arith.constant 0 : i32
    %c0_i32_1 = arith.constant 0 : i32
    return %c0_i32, %c0_i32_0 : i32, i32
  }
  func.func @transform_7(%arg0: i32) -> (i32, i32) {
    %c0_i32 = arith.constant 0 : i32
    %c0_i32_0 = arith.constant 0 : i32
    return %arg0, %c0_i32 : i32, i32
  }
}

</mosaic_0001>

<llo_original>
// kernel: tpu_custom_call.1
$region0: #{tpu_custom_call.1}
  #allocation0 [shape = 'u32[]', space=smem, size = 0x4, offset = 0x4, fixed_abs, tag = 'smem constant byte address 0x4 - core index']
  #allocation1 [shape = 'u32[72,128]{1,0:T(1,128)}', space=vmem, size = 0x9000, scoped, tag = 'internal scratch']
  %s0 = inlined_call_operand.hbm [shape: f32[16,32], index: 0, kind: input, shape index: {}]
  %s1 = inlined_call_operand.hbm [shape: bf16[32,1024], index: 1, kind: input, shape index: {}]
  %s2 = inlined_call_operand.hbm [shape: f32[1,1024], index: 2, kind: input, shape index: {}]
  %s3 = inlined_call_operand.hbm [shape: bf16[1024,512], index: 3, kind: input, shape index: {}]
  %s4 = inlined_call_operand.hbm [shape: f32[1,512], index: 4, kind: input, shape index: {}]
  %s5 = inlined_call_operand.hbm [shape: bf16[512,128], index: 5, kind: input, shape index: {}]
  %s6 = inlined_call_operand.vmem [shape: f32[1,128], index: 6, kind: input, shape index: {}]
  %s7 = inlined_call_operand.hbm [shape: f32[16,128], index: 7, kind: output, shape index: {}]
  %s8 = sld [smem:[#allocation0]]
  $region62: #{tpu_custom_call.1} parent=0
    _
  %s10 = ssub.s32 1, %s8
  %s11 = scalar_select 0, %s10, %s8
  $region1: #{tpu_custom_call.1} parent=0
    #allocation2 [shape = 'u8[8192]{0}', space=vmem, size = 0x2000, scoped, tag = 'input window, operand 0, single buffered']
    #allocation3 [shape = 's32[1]{0}', space=sflag, size = 0x4, scoped, tag = 'scoped memory for tpu_custom_call.1']
    #allocation4 [shape = 's32[1]{0}', space=sflag, size = 0x4, scoped, tag = 'scoped memory for tpu_custom_call.1']
    #allocation5 [shape = 'u8[65536]{0}', space=vmem, size = 0x10000, scoped, tag = 'input window, operand 1, single buffered']
    #allocation6 [shape = 's32[1]{0}', space=sflag, size = 0x4, scoped, tag = 'scoped memory for tpu_custom_call.1']
    #allocation7 [shape = 'u8[4096]{0}', space=vmem, size = 0x1000, scoped, tag = 'input window, operand 2, single buffered']
    #allocation8 [shape = 'u8[1048576]{0}', space=vmem, size = 0x100000, scoped, tag = 'input window, operand 3, single buffered']
    #allocation9 [shape = 's32[1]{0}', space=sflag, size = 0x4, scoped, tag = 'scoped memory for tpu_custom_call.1']
    #allocation10 [shape = 'u8[2048]{0}', space=vmem, size = 0x800, scoped, tag = 'input window, operand 4, single buffered']
    #allocation11 [shape = 'u8[131072]{0}', space=vmem, size = 0x20000, scoped, tag = 'input window, operand 5, single buffered']
    #allocation12 [shape = 's32[1]{0}', space=sflag, size = 0x4, scoped, tag = 'scoped memory for tpu_custom_call.1']
    #allocation13 [shape = 'u8[8192]{0}', space=vmem, size = 0x2000, scoped, tag = 'output window, operand 0, single buffered']
    %12 = vsyncpa [#allocation3], 0
    %13 = vsyncpa [#allocation6], 0
    %14 = vsyncpa [#allocation9], 0
    %15 = vsyncpa [#allocation12], 0
    %16 = vsyncpa [#allocation4], 0
    // Predicated region
    $region2: #{tpu_custom_call.1} parent=1 // pred_check
      _
    $region3: #{tpu_custom_call.1} parent=1 // pred_check_branch
      %18 = sbr.rel (0) target = $region5
    $region4: #{tpu_custom_call.1} parent=1 // pred_region
      %20 = vsyncadd [#allocation3], 0
      %s21 = sshll.u32 %s0, 4
      %s22 = int_to_ptr.hbm [resolvable:$true] %s21
      %s23 = sshll.u32 [#allocation2], 4
      %s24 = int_to_ptr.vmem [resolvable:$true] %s23
      %29 = dma.hbm_to_vmem [thread:$0]  %s22, 256, %s24, [#allocation3], 128, 128, 8
    $region5: #{tpu_custom_call.1} parent=1 // pred_fallthru
      _
    // Predicated region
    $region6: #{tpu_custom_call.1} parent=1 // pred_check
      _
    $region7: #{tpu_custom_call.1} parent=1 // pred_check_branch
      %31 = sbr.rel (0) target = $region9
    $region8: #{tpu_custom_call.1} parent=1 // pred_region
      %33 = vsyncadd [#allocation6], 0
      %s34 = sshll.u32 %s1, 4
      %s35 = int_to_ptr.hbm [resolvable:$true] %s34
      %s36 = sshll.u32 [#allocation5], 4
      %s37 = int_to_ptr.vmem [resolvable:$true] %s36
      %42 = dma.hbm_to_vmem [thread:$0]  %s35, 2048, %s37, [#allocation6], 512, 512, 32
    $region9: #{tpu_custom_call.1} parent=1 // pred_fallthru
      _
    // Predicated region
    $region10: #{tpu_custom_call.1} parent=1 // pred_check
      _
    $region11: #{tpu_custom_call.1} parent=1 // pred_check_branch
      %44 = sbr.rel (0) target = $region13
    $region12: #{tpu_custom_call.1} parent=1 // pred_region
      %46 = vsyncadd [#allocation6], 0
      %s48 = sshll.u32 %s2, 4
      %s49 = int_to_ptr.hbm [resolvable:$true] %s48
      %s50 = sshll.u32 [#allocation7], 4
      %s51 = int_to_ptr.vmem [resolvable:$true] %s50
      %53 = dma.hbm_to_vmem [thread:$0]  %s49, 128, %s51, [#allocation6]
    $region13: #{tpu_custom_call.1} parent=1 // pred_fallthru
      _
    // Predicated region
    $region14: #{tpu_custom_call.1} parent=1 // pred_check
      _
    $region15: #{tpu_custom_call.1} parent=1 // pred_check_branch
      %55 = sbr.rel (0) target = $region17
    $region16: #{tpu_custom_call.1} parent=1 // pred_region
      %57 = vsyncadd [#allocation9], 0
      %s58 = sshll.u32 %s3, 4
      %s59 = int_to_ptr.hbm [resolvable:$true] %s58
      %s60 = sshll.u32 [#allocation8], 4
      %s61 = int_to_ptr.vmem [resolvable:$true] %s60
      %66 = dma.hbm_to_vmem [thread:$0]  %s59, 32768, %s61, [#allocation9], 256, 256, 16
    $region17: #{tpu_custom_call.1} parent=1 // pred_fallthru
      _
    // Predicated region
    $region18: #{tpu_custom_call.1} parent=1 // pred_check
      _
    $region19: #{tpu_custom_call.1} parent=1 // pred_check_branch
      %68 = sbr.rel (0) target = $region21
    $region20: #{tpu_custom_call.1} parent=1 // pred_region
      %70 = vsyncadd [#allocation9], 0
      %s72 = sshll.u32 %s4, 4
      %s73 = int_to_ptr.hbm [resolvable:$true] %s72
      %s74 = sshll.u32 [#allocation10], 4
      %s75 = int_to_ptr.vmem [resolvable:$true] %s74
      %77 = dma.hbm_to_vmem [thread:$0]  %s73, 64, %s75, [#allocation9]
    $region21: #{tpu_custom_call.1} parent=1 // pred_fallthru
      _
    // Predicated region
    $region22: #{tpu_custom_call.1} parent=1 // pred_check
      _
    $region23: #{tpu_custom_call.1} parent=1 // pred_check_branch
      %79 = sbr.rel (0) target = $region25
    $region24: #{tpu_custom_call.1} parent=1 // pred_region
      %81 = vsyncadd [#allocation12], 0
      %s82 = sshll.u32 %s5, 4
      %s83 = int_to_ptr.hbm [resolvable:$true] %s82
      %s84 = sshll.u32 [#allocation11], 4
      %s85 = int_to_ptr.vmem [resolvable:$true] %s84
      %90 = dma.hbm_to_vmem [thread:$0]  %s83, 4096, %s85, [#allocation12], 64, 64, 4
    $region25: #{tpu_custom_call.1} parent=1 // pred_fallthru
      _
    // Predicated region
    $region26: #{tpu_custom_call.1} parent=1 // pred_check
      _
    $region27: #{tpu_custom_call.1} parent=1 // pred_check_branch
      %92 = sbr.rel (0) target = $region29
    $region28: #{tpu_custom_call.1} parent=1 // pred_region
      _
    $region29: #{tpu_custom_call.1} parent=1 // pred_fallthru
      _
    // Predicated region
    $region30: #{tpu_custom_call.1} parent=1 // pred_check
      _
    $region31: #{tpu_custom_call.1} parent=1 // pred_check_branch
      %94 = sbr.rel (0) target = $region33
    $region32: #{tpu_custom_call.1} parent=1 // pred_region
      %96 = dma.done [#allocation3], 256
    $region33: #{tpu_custom_call.1} parent=1 // pred_fallthru
      _
    // Predicated region
    $region34: #{tpu_custom_call.1} parent=1 // pred_check
      _
    $region35: #{tpu_custom_call.1} parent=1 // pred_check_branch
      %98 = sbr.rel (0) target = $region37
    $region36: #{tpu_custom_call.1} parent=1 // pred_region
      %100 = dma.done [#allocation6], 2048
    $region37: #{tpu_custom_call.1} parent=1 // pred_fallthru
      _
    // Predicated region
    $region38: #{tpu_custom_call.1} parent=1 // pred_check
      _
    $region39: #{tpu_custom_call.1} parent=1 // pred_check_branch
      %102 = sbr.rel (0) target = $region41
    $region40: #{tpu_custom_call.1} parent=1 // pred_region
      %104 = dma.done [#allocation6], 128
    $region41: #{tpu_custom_call.1} parent=1 // pred_fallthru
      _
    // Predicated region
    $region42: #{tpu_custom_call.1} parent=1 // pred_check
      _
    $region43: #{tpu_custom_call.1} parent=1 // pred_check_branch
      %106 = sbr.rel (0) target = $region45
    $region44: #{tpu_custom_call.1} parent=1 // pred_region
      %108 = dma.done [#allocation9], 32768
    $region45: #{tpu_custom_call.1} parent=1 // pred_fallthru
      _
    // Predicated region
    $region46: #{tpu_custom_call.1} parent=1 // pred_check
      _
    $region47: #{tpu_custom_call.1} parent=1 // pred_check_branch
      %110 = sbr.rel (0) target = $region49
    $region48: #{tpu_custom_call.1} parent=1 // pred_region
      %112 = dma.done [#allocation9], 64
    $region49: #{tpu_custom_call.1} parent=1 // pred_fallthru
      _
    // Predicated region
    $region50: #{tpu_custom_call.1} parent=1 // pred_check
      _
    $region51: #{tpu_custom_call.1} parent=1 // pred_check_branch
      %114 = sbr.rel (0) target = $region53
    $region52: #{tpu_custom_call.1} parent=1 // pred_region
      %116 = dma.done [#allocation12], 4096
    $region53: #{tpu_custom_call.1} parent=1 // pred_fallthru
      _
    %v118 = vld [vmem:[#allocation2] sm:$0xff]
    %v119 = vld [vmem:[#allocation2 + $0x8] sm:$0xff]
    %v120 = vpack.c.bf16 %v119, %v118
    %v121 = vld [vmem:[#allocation5] sm:$0xff]
    %v122 = vld [vmem:[#allocation5 + $0x8] sm:$0xff]
    %v123 = vld [vmem:[#allocation5 + $0x10] sm:$0xff]
    %v124 = vld [vmem:[#allocation5 + $0x18] sm:$0xff]
    %v125 = vld [vmem:[#allocation5 + $0x20] sm:$0xff]
    %v126 = vld [vmem:[#allocation5 + $0x28] sm:$0xff]
    %v127 = vld [vmem:[#allocation5 + $0x30] sm:$0xff]
    %v128 = vld [vmem:[#allocation5 + $0x38] sm:$0xff]
    %v129 = vld [vmem:[#allocation5 + $0x40] sm:$0xff]
    %v130 = vld [vmem:[#allocation5 + $0x48] sm:$0xff]
    %v131 = vld [vmem:[#allocation5 + $0x50] sm:$0xff]
    %v132 = vld [vmem:[#allocation5 + $0x58] sm:$0xff]
    %v133 = vld [vmem:[#allocation5 + $0x60] sm:$0xff]
    %v134 = vld [vmem:[#allocation5 + $0x68] sm:$0xff]
    %v135 = vld [vmem:[#allocation5 + $0x70] sm:$0xff]
    %v136 = vld [vmem:[#allocation5 + $0x78] sm:$0xff]
    %v137 = vld [vmem:[#allocation7] sm:$0xff]
    %v139 = vperm.slane %v137, 0
    %v140 = vperm.slane %v137, 1
    %v141 = vperm.slane %v137, 2
    %v142 = vperm.slane %v137, 3
    %v143 = vperm.slane %v137, 4
    %v144 = vperm.slane %v137, 5
    %v145 = vperm.slane %v137, 6
    %v146 = vperm.slane %v137, 7
    %v171 = vunpack.c.l.b16 %v121
    %v172 = vunpack.c.h.b16 %v121
    %v173 = vunpack.c.l.b16 %v122
    %v174 = vunpack.c.h.b16 %v122
    %v175 = vunpack.c.l.b16 %v123
    %v176 = vunpack.c.h.b16 %v123
    %v177 = vunpack.c.l.b16 %v124
    %v178 = vunpack.c.h.b16 %v124
    %v179 = vunpack.c.l.b16 %v125
    %v180 = vunpack.c.h.b16 %v125
    %v181 = vunpack.c.l.b16 %v126
    %v182 = vunpack.c.h.b16 %v126
    %v183 = vunpack.c.l.b16 %v127
    %v184 = vunpack.c.h.b16 %v127
    %v185 = vunpack.c.l.b16 %v128
    %v186 = vunpack.c.h.b16 %v128
    %v187 = vunpack.c.l.b16 %v129
    %v188 = vunpack.c.h.b16 %v129
    %v189 = vunpack.c.l.b16 %v130
    %v190 = vunpack.c.h.b16 %v130
    %v191 = vunpack.c.l.b16 %v131
    %v192 = vunpack.c.h.b16 %v131
    %v193 = vunpack.c.l.b16 %v132
    %v194 = vunpack.c.h.b16 %v132
    %v195 = vunpack.c.l.b16 %v133
    %v196 = vunpack.c.h.b16 %v133
    %v197 = vunpack.c.l.b16 %v134
    %v198 = vunpack.c.h.b16 %v134
    %v199 = vunpack.c.l.b16 %v135
    %v200 = vunpack.c.h.b16 %v135
    %v201 = vunpack.c.l.b16 %v136
    %v202 = vunpack.c.h.b16 %v136
    %v203 = vpack.c.b16 %v179, %v171
    %v204 = vpack.c.b16 %v180, %v172
    %v205 = vpack.c.b16 %v181, %v173
    %v206 = vpack.c.b16 %v182, %v174
    %v207 = vpack.c.b16 %v183, %v175
    %v208 = vpack.c.b16 %v184, %v176
    %v209 = vpack.c.b16 %v185, %v177
    %v210 = vpack.c.b16 %v186, %v178
    %v211 = vpack.c.b16 %v195, %v187
    %v212 = vpack.c.b16 %v196, %v188
    %v213 = vpack.c.b16 %v197, %v189
    %v214 = vpack.c.b16 %v198, %v190
    %v215 = vpack.c.b16 %v199, %v191
    %v216 = vpack.c.b16 %v200, %v192
    %v217 = vpack.c.b16 %v201, %v193
    %v218 = vpack.c.b16 %v202, %v194
    %vm235 = vcmask 261120
    %v237 = vsel %vm235, %v120, 0
    %239 = vmatpush.bf16.msra.mxu0 0
    %240 = vmatpush.bf16.msra.mxu0 0
    %241 = vmatpush.bf16.msra.mxu0 0
    %242 = vmatpush.bf16.msra.mxu0 0
    %243 = vmatpush.bf16.msra.mxu0 0
    %244 = vmatpush.bf16.msra.mxu0 0
    %245 = vmatpush.bf16.msra.mxu0 %v211
    %246 = vmatpush.bf16.msra.mxu0 %v203
    %247 = vmatmul.bf16.gmra.mxu0 %v237
    %v248 = vpop.f32.mrf.mxu0
    %v249 = vadd.f32 %v139, %v248
    %v250 = vpop.f32.mrf.mxu0
    %v251 = vadd.f32 %v139, %v250
    %252 = vdwg.mxu0
    %253 = vmatpush.bf16.msra.mxu0 0
    %254 = vmatpush.bf16.msra.mxu0 0
    %255 = vmatpush.bf16.msra.mxu0 0
    %256 = vmatpush.bf16.msra.mxu0 0
    %257 = vmatpush.bf16.msra.mxu0 0
    %258 = vmatpush.bf16.msra.mxu0 0
    %259 = vmatpush.bf16.msra.mxu0 %v212
    %260 = vmatpush.bf16.msra.mxu0 %v204
    %261 = vmatmul.bf16.gmra.mxu0 %v237
    %v262 = vpop.f32.mrf.mxu0
    %v263 = vadd.f32 %v140, %v262
    %v264 = vpop.f32.mrf.mxu0
    %v265 = vadd.f32 %v140, %v264
    %266 = vdwg.mxu0
    %267 = vmatpush.bf16.msra.mxu0 0
    %268 = vmatpush.bf16.msra.mxu0 0
    %269 = vmatpush.bf16.msra.mxu0 0
    %270 = vmatpush.bf16.msra.mxu0 0
    %271 = vmatpush.bf16.msra.mxu0 0
    %272 = vmatpush.bf16.msra.mxu0 0
    %273 = vmatpush.bf16.msra.mxu0 %v213
    %274 = vmatpush.bf16.msra.mxu0 %v205
    %275 = vmatmul.bf16.gmra.mxu0 %v237
    %v276 = vpop.f32.mrf.mxu0
    %v277 = vadd.f32 %v141, %v276
    %v278 = vpop.f32.mrf.mxu0
    %v279 = vadd.f32 %v141, %v278
    %280 = vdwg.mxu0
    %281 = vmatpush.bf16.msra.mxu0 0
    %282 = vmatpush.bf16.msra.mxu0 0
    %283 = vmatpush.bf16.msra.mxu0 0
    %284 = vmatpush.bf16.msra.mxu0 0
    %285 = vmatpush.bf16.msra.mxu0 0
    %286 = vmatpush.bf16.msra.mxu0 0
    %287 = vmatpush.bf16.msra.mxu0 %v214
    %288 = vmatpush.bf16.msra.mxu0 %v206
    %289 = vmatmul.bf16.gmra.mxu0 %v237
    %v290 = vpop.f32.mrf.mxu0
    %v291 = vadd.f32 %v142, %v290
    %v292 = vpop.f32.mrf.mxu0
    %v293 = vadd.f32 %v142, %v292
    %294 = vdwg.mxu0
    %295 = vmatpush.bf16.msra.mxu0 0
    %296 = vmatpush.bf16.msra.mxu0 0
    %297 = vmatpush.bf16.msra.mxu0 0
    %298 = vmatpush.bf16.msra.mxu0 0
    %299 = vmatpush.bf16.msra.mxu0 0
    %300 = vmatpush.bf16.msra.mxu0 0
    %301 = vmatpush.bf16.msra.mxu0 %v215
    %302 = vmatpush.bf16.msra.mxu0 %v207
    %303 = vmatmul.bf16.gmra.mxu0 %v237
    %v304 = vpop.f32.mrf.mxu0
    %v305 = vadd.f32 %v143, %v304
    %v306 = vpop.f32.mrf.mxu0
    %v307 = vadd.f32 %v143, %v306
    %308 = vdwg.mxu0
    %309 = vmatpush.bf16.msra.mxu0 0
    %310 = vmatpush.bf16.msra.mxu0 0
    %311 = vmatpush.bf16.msra.mxu0 0
    %312 = vmatpush.bf16.msra.mxu0 0
    %313 = vmatpush.bf16.msra.mxu0 0
    %314 = vmatpush.bf16.msra.mxu0 0
    %315 = vmatpush.bf16.msra.mxu0 %v216
    %316 = vmatpush.bf16.msra.mxu0 %v208
    %317 = vmatmul.bf16.gmra.mxu0 %v237
    %v318 = vpop.f32.mrf.mxu0
    %v319 = vadd.f32 %v144, %v318
    %v320 = vpop.f32.mrf.mxu0
    %v321 = vadd.f32 %v144, %v320
    %322 = vdwg.mxu0
    %323 = vmatpush.bf16.msra.mxu0 0
    %324 = vmatpush.bf16.msra.mxu0 0
    %325 = vmatpush.bf16.msra.mxu0 0
    %326 = vmatpush.bf16.msra.mxu0 0
    %327 = vmatpush.bf16.msra.mxu0 0
    %328 = vmatpush.bf16.msra.mxu0 0
    %329 = vmatpush.bf16.msra.mxu0 %v217
    %330 = vmatpush.bf16.msra.mxu0 %v209
    %331 = vmatmul.bf16.gmra.mxu0 %v237
    %v332 = vpop.f32.mrf.mxu0
    %v333 = vadd.f32 %v145, %v332
    %v334 = vpop.f32.mrf.mxu0
    %v335 = vadd.f32 %v145, %v334
    %336 = vdwg.mxu0
    %337 = vmatpush.bf16.msra.mxu0 0
    %338 = vmatpush.bf16.msra.mxu0 0
    %339 = vmatpush.bf16.msra.mxu0 0
    %340 = vmatpush.bf16.msra.mxu0 0
    %341 = vmatpush.bf16.msra.mxu0 0
    %342 = vmatpush.bf16.msra.mxu0 0
    %343 = vmatpush.bf16.msra.mxu0 %v218
    %344 = vmatpush.bf16.msra.mxu0 %v210
    %345 = vmatmul.bf16.gmra.mxu0 %v237
    %v346 = vpop.f32.mrf.mxu0
    %v347 = vadd.f32 %v146, %v346
    %v348 = vpop.f32.mrf.mxu0
    %v349 = vadd.f32 %v146, %v348
    %350 = vdwg.mxu0
    %v351 = vmax.f32 %v249, 0.0
    %v352 = vmax.f32 %v263, 0.0
    %v353 = vmax.f32 %v277, 0.0
    %v354 = vmax.f32 %v291, 0.0
    %v355 = vmax.f32 %v305, 0.0
    %v356 = vmax.f32 %v319, 0.0
    %v357 = vmax.f32 %v333, 0.0
    %v358 = vmax.f32 %v347, 0.0
    %v359 = vmax.f32 %v251, 0.0
    %v360 = vmax.f32 %v265, 0.0
    %v361 = vmax.f32 %v279, 0.0
    %v362 = vmax.f32 %v293, 0.0
    %v363 = vmax.f32 %v307, 0.0
    %v364 = vmax.f32 %v321, 0.0
    %v365 = vmax.f32 %v335, 0.0
    %v366 = vmax.f32 %v349, 0.0
    %v367 = vpack.c.bf16 %v359, %v351
    %v368 = vpack.c.bf16 %v360, %v352
    %v369 = vpack.c.bf16 %v361, %v353
    %v370 = vpack.c.bf16 %v362, %v354
    %v371 = vpack.c.bf16 %v363, %v355
    %v372 = vpack.c.bf16 %v364, %v356
    %v373 = vpack.c.bf16 %v365, %v357
    %v374 = vpack.c.bf16 %v366, %v358
    %v375 = vld [vmem:[#allocation8] sm:$0xff]
    %v376 = vld [vmem:[#allocation8 + $0x8] sm:$0xff]
    %v377 = vld [vmem:[#allocation8 + $0x10] sm:$0xff]
    %v378 = vld [vmem:[#allocation8 + $0x18] sm:$0xff]
    %v379 = vld [vmem:[#allocation8 + $0x20] sm:$0xff]
    %v380 = vld [vmem:[#allocation8 + $0x28] sm:$0xff]
    %v381 = vld [vmem:[#allocation8 + $0x30] sm:$0xff]
    %v382 = vld [vmem:[#allocation8 + $0x38] sm:$0xff]
    %v383 = vld [vmem:[#allocation8 + $0x40] sm:$0xff]
    %v384 = vld [vmem:[#allocation8 + $0x48] sm:$0xff]
    %v385 = vld [vmem:[#allocation8 + $0x50] sm:$0xff]
    %v386 = vld [vmem:[#allocation8 + $0x58] sm:$0xff]
    %v387 = vld [vmem:[#allocation8 + $0x60] sm:$0xff]
    %v388 = vld [vmem:[#allocation8 + $0x68] sm:$0xff]
    %v389 = vld [vmem:[#allocation8 + $0x70] sm:$0xff]
    %v390 = vld [vmem:[#allocation8 + $0x78] sm:$0xff]
    %v391 = vld [vmem:[#allocation8 + $0x80] sm:$0xff]
    %v392 = vld [vmem:[#allocation8 + $0x88] sm:$0xff]
    %v393 = vld [vmem:[#allocation8 + $0x90] sm:$0xff]
    %v394 = vld [vmem:[#allocation8 + $0x98] sm:$0xff]
    %v395 = vld [vmem:[#allocation8 + $0xa0] sm:$0xff]
    %v396 = vld [vmem:[#allocation8 + $0xa8] sm:$0xff]
    %v397 = vld [vmem:[#allocation8 + $0xb0] sm:$0xff]
    %v398 = vld [vmem:[#allocation8 + $0xb8] sm:$0xff]
    %v399 = vld [vmem:[#allocation8 + $0xc0] sm:$0xff]
    %v400 = vld [vmem:[#allocation8 + $0xc8] sm:$0xff]
    %v401 = vld [vmem:[#allocation8 + $0xd0] sm:$0xff]
    %v402 = vld [vmem:[#allocation8 + $0xd8] sm:$0xff]
    %v403 = vld [vmem:[#allocation8 + $0xe0] sm:$0xff]
    %v404 = vld [vmem:[#allocation8 + $0xe8] sm:$0xff]
    %v405 = vld [vmem:[#allocation8 + $0xf0] sm:$0xff]
    %v406 = vld [vmem:[#allocation8 + $0xf8] sm:$0xff]
    %v407 = vld [vmem:[#allocation8 + $0x100] sm:$0xff]
    %v408 = vld [vmem:[#allocation8 + $0x108] sm:$0xff]
    %v409 = vld [vmem:[#allocation8 + $0x110] sm:$0xff]
    %v410 = vld [vmem:[#allocation8 + $0x118] sm:$0xff]
    %v411 = vld [vmem:[#allocation8 + $0x120] sm:$0xff]
    %v412 = vld [vmem:[#allocation8 + $0x128] sm:$0xff]
    %v413 = vld [vmem:[#allocation8 + $0x130] sm:$0xff]
    %v414 = vld [vmem:[#allocation8 + $0x138] sm:$0xff]
    %v415 = vld [vmem:[#allocation8 + $0x140] sm:$0xff]
    %v416 = vld [vmem:[#allocation8 + $0x148] sm:$0xff]
    %v417 = vld [vmem:[#allocation8 + $0x150] sm:$0xff]
    %v418 = vld [vmem:[#allocation8 + $0x158] sm:$0xff]
    %v419 = vld [vmem:[#allocation8 + $0x160] sm:$0xff]
    %v420 = vld [vmem:[#allocation8 + $0x168] sm:$0xff]
    %v421 = vld [vmem:[#allocation8 + $0x170] sm:$0xff]
    %v422 = vld [vmem:[#allocation8 + $0x178] sm:$0xff]
    %v423 = vld [vmem:[#allocation8 + $0x180] sm:$0xff]
    %v424 = vld [vmem:[#allocation8 + $0x188] sm:$0xff]
    %v425 = vld [vmem:[#allocation8 + $0x190] sm:$0xff]
    %v426 = vld [vmem:[#allocation8 + $0x198] sm:$0xff]
    %v427 = vld [vmem:[#allocation8 + $0x1a0] sm:$0xff]
    %v428 = vld [vmem:[#allocation8 + $0x1a8] sm:$0xff]
    %v429 = vld [vmem:[#allocation8 + $0x1b0] sm:$0xff]
    %v430 = vld [vmem:[#allocation8 + $0x1b8] sm:$0xff]
    %v431 = vld [vmem:[#allocation8 + $0x1c0] sm:$0xff]
    %v432 = vld [vmem:[#allocation8 + $0x1c8] sm:$0xff]
    %v433 = vld [vmem:[#allocation8 + $0x1d0] sm:$0xff]
    %v434 = vld [vmem:[#allocation8 + $0x1d8] sm:$0xff]
    %v435 = vld [vmem:[#allocation8 + $0x1e0] sm:$0xff]
    %v436 = vld [vmem:[#allocation8 + $0x1e8] sm:$0xff]
    %v437 = vld [vmem:[#allocation8 + $0x1f0] sm:$0xff]
    %v438 = vld [vmem:[#allocation8 + $0x1f8] sm:$0xff]
    %v439 = vld [vmem:[#allocation8 + $0x200] sm:$0xff]
    %v440 = vld [vmem:[#allocation8 + $0x208] sm:$0xff]
    %v441 = vld [vmem:[#allocation8 + $0x210] sm:$0xff]
    %v442 = vld [vmem:[#allocation8 + $0x218] sm:$0xff]
    %v443 = vld [vmem:[#allocation8 + $0x220] sm:$0xff]
    %v444 = vld [vmem:[#allocation8 + $0x228] sm:$0xff]
    %v445 = vld [vmem:[#allocation8 + $0x230] sm:$0xff]
    %v446 = vld [vmem:[#allocation8 + $0x238] sm:$0xff]
    %v447 = vld [vmem:[#allocation8 + $0x240] sm:$0xff]
    %v448 = vld [vmem:[#allocation8 + $0x248] sm:$0xff]
    %v449 = vld [vmem:[#allocation8 + $0x250] sm:$0xff]
    %v450 = vld [vmem:[#allocation8 + $0x258] sm:$0xff]
    %v451 = vld [vmem:[#allocation8 + $0x260] sm:$0xff]
    %v452 = vld [vmem:[#allocation8 + $0x268] sm:$0xff]
    %v453 = vld [vmem:[#allocation8 + $0x270] sm:$0xff]
    %v454 = vld [vmem:[#allocation8 + $0x278] sm:$0xff]
    %v455 = vld [vmem:[#allocation8 + $0x280] sm:$0xff]
    %v456 = vld [vmem:[#allocation8 + $0x288] sm:$0xff]
    %v457 = vld [vmem:[#allocation8 + $0x290] sm:$0xff]
    %v458 = vld [vmem:[#allocation8 + $0x298] sm:$0xff]
    %v459 = vld [vmem:[#allocation8 + $0x2a0] sm:$0xff]
    %v460 = vld [vmem:[#allocation8 + $0x2a8] sm:$0xff]
    %v461 = vld [vmem:[#allocation8 + $0x2b0] sm:$0xff]
    %v462 = vld [vmem:[#allocation8 + $0x2b8] sm:$0xff]
    %v463 = vld [vmem:[#allocation8 + $0x2c0] sm:$0xff]
    %v464 = vld [vmem:[#allocation8 + $0x2c8] sm:$0xff]
    %v465 = vld [vmem:[#allocation8 + $0x2d0] sm:$0xff]
    %v466 = vld [vmem:[#allocation8 + $0x2d8] sm:$0xff]
    %v467 = vld [vmem:[#allocation8 + $0x2e0] sm:$0xff]
    %v468 = vld [vmem:[#allocation8 + $0x2e8] sm:$0xff]
    %v469 = vld [vmem:[#allocation8 + $0x2f0] sm:$0xff]
    %v470 = vld [vmem:[#allocation8 + $0x2f8] sm:$0xff]
    %v471 = vld [vmem:[#allocation8 + $0x300] sm:$0xff]
    %v472 = vld [vmem:[#allocation8 + $0x308] sm:$0xff]
    %v473 = vld [vmem:[#allocation8 + $0x310] sm:$0xff]
    %v474 = vld [vmem:[#allocation8 + $0x318] sm:$0xff]
    %v475 = vld [vmem:[#allocation8 + $0x320] sm:$0xff]
    %v476 = vld [vmem:[#allocation8 + $0x328] sm:$0xff]
    %v477 = vld [vmem:[#allocation8 + $0x330] sm:$0xff]
    %v478 = vld [vmem:[#allocation8 + $0x338] sm:$0xff]
    %v479 = vld [vmem:[#allocation8 + $0x340] sm:$0xff]
    %v480 = vld [vmem:[#allocation8 + $0x348] sm:$0xff]
    %v481 = vld [vmem:[#allocation8 + $0x350] sm:$0xff]
    %v482 = vld [vmem:[#allocation8 + $0x358] sm:$0xff]
    %v483 = vld [vmem:[#allocation8 + $0x360] sm:$0xff]
    %v484 = vld [vmem:[#allocation8 + $0x368] sm:$0xff]
    %v485 = vld [vmem:[#allocation8 + $0x370] sm:$0xff]
    %v486 = vld [vmem:[#allocation8 + $0x378] sm:$0xff]
    %v487 = vld [vmem:[#allocation8 + $0x380] sm:$0xff]
    %v488 = vld [vmem:[#allocation8 + $0x388] sm:$0xff]
    %v489 = vld [vmem:[#allocation8 + $0x390] sm:$0xff]
    %v490 = vld [vmem:[#allocation8 + $0x398] sm:$0xff]
    %v491 = vld [vmem:[#allocation8 + $0x3a0] sm:$0xff]
    %v492 = vld [vmem:[#allocation8 + $0x3a8] sm:$0xff]
    %v493 = vld [vmem:[#allocation8 + $0x3b0] sm:$0xff]
    %v494 = vld [vmem:[#allocation8 + $0x3b8] sm:$0xff]
    %v495 = vld [vmem:[#allocation8 + $0x3c0] sm:$0xff]
    %v496 = vld [vmem:[#allocation8 + $0x3c8] sm:$0xff]
    %v497 = vld [vmem:[#allocation8 + $0x3d0] sm:$0xff]
    %v498 = vld [vmem:[#allocation8 + $0x3d8] sm:$0xff]
    %v499 = vld [vmem:[#allocation8 + $0x3e0] sm:$0xff]
    %v500 = vld [vmem:[#allocation8 + $0x3e8] sm:$0xff]
    %v501 = vld [vmem:[#allocation8 + $0x3f0] sm:$0xff]
    %v502 = vld [vmem:[#allocation8 + $0x3f8] sm:$0xff]
    %v503 = vld [vmem:[#allocation8 + $0x400] sm:$0xff]
    %v504 = vld [vmem:[#allocation8 + $0x408] sm:$0xff]
    %v505 = vld [vmem:[#allocation8 + $0x410] sm:$0xff]
    %v506 = vld [vmem:[#allocation8 + $0x418] sm:$0xff]
    %v507 = vld [vmem:[#allocation8 + $0x420] sm:$0xff]
    %v508 = vld [vmem:[#allocation8 + $0x428] sm:$0xff]
    %v509 = vld [vmem:[#allocation8 + $0x430] sm:$0xff]
    %v510 = vld [vmem:[#allocation8 + $0x438] sm:$0xff]
    %v511 = vld [vmem:[#allocation8 + $0x440] sm:$0xff]
    %v512 = vld [vmem:[#allocation8 + $0x448] sm:$0xff]
    %v513 = vld [vmem:[#allocation8 + $0x450] sm:$0xff]
    %v514 = vld [vmem:[#allocation8 + $0x458] sm:$0xff]
    %v515 = vld [vmem:[#allocation8 + $0x460] sm:$0xff]
    %v516 = vld [vmem:[#allocation8 + $0x468] sm:$0xff]
    %v517 = vld [vmem:[#allocation8 + $0x470] sm:$0xff]
    %v518 = vld [vmem:[#allocation8 + $0x478] sm:$0xff]
    %v519 = vld [vmem:[#allocation8 + $0x480] sm:$0xff]
    %v520 = vld [vmem:[#allocation8 + $0x488] sm:$0xff]
    %v521 = vld [vmem:[#allocation8 + $0x490] sm:$0xff]
    %v522 = vld [vmem:[#allocation8 + $0x498] sm:$0xff]
    %v523 = vld [vmem:[#allocation8 + $0x4a0] sm:$0xff]
    %v524 = vld [vmem:[#allocation8 + $0x4a8] sm:$0xff]
    %v525 = vld [vmem:[#allocation8 + $0x4b0] sm:$0xff]
    %v526 = vld [vmem:[#allocation8 + $0x4b8] sm:$0xff]
    %v527 = vld [vmem:[#allocation8 + $0x4c0] sm:$0xff]
    %v528 = vld [vmem:[#allocation8 + $0x4c8] sm:$0xff]
    %v529 = vld [vmem:[#allocation8 + $0x4d0] sm:$0xff]
    %v530 = vld [vmem:[#allocation8 + $0x4d8] sm:$0xff]
    %v531 = vld [vmem:[#allocation8 + $0x4e0] sm:$0xff]
    %v532 = vld [vmem:[#allocation8 + $0x4e8] sm:$0xff]
    %v533 = vld [vmem:[#allocation8 + $0x4f0] sm:$0xff]
    %v534 = vld [vmem:[#allocation8 + $0x4f8] sm:$0xff]
    %v535 = vld [vmem:[#allocation8 + $0x500] sm:$0xff]
    %v536 = vld [vmem:[#allocation8 + $0x508] sm:$0xff]
    %v537 = vld [vmem:[#allocation8 + $0x510] sm:$0xff]
    %v538 = vld [vmem:[#allocation8 + $0x518] sm:$0xff]
    %v539 = vld [vmem:[#allocation8 + $0x520] sm:$0xff]
    %v540 = vld [vmem:[#allocation8 + $0x528] sm:$0xff]
    %v541 = vld [vmem:[#allocation8 + $0x530] sm:$0xff]
    %v542 = vld [vmem:[#allocation8 + $0x538] sm:$0xff]
    %v543 = vld [vmem:[#allocation8 + $0x540] sm:$0xff]
    %v544 = vld [vmem:[#allocation8 + $0x548] sm:$0xff]
    %v545 = vld [vmem:[#allocation8 + $0x550] sm:$0xff]
    %v546 = vld [vmem:[#allocation8 + $0x558] sm:$0xff]
    %v547 = vld [vmem:[#allocation8 + $0x560] sm:$0xff]
    %v548 = vld [vmem:[#allocation8 + $0x568] sm:$0xff]
    %v549 = vld [vmem:[#allocation8 + $0x570] sm:$0xff]
    %v550 = vld [vmem:[#allocation8 + $0x578] sm:$0xff]
    %v551 = vld [vmem:[#allocation8 + $0x580] sm:$0xff]
    %v552 = vld [vmem:[#allocation8 + $0x588] sm:$0xff]
    %v553 = vld [vmem:[#allocation8 + $0x590] sm:$0xff]
    %v554 = vld [vmem:[#allocation8 + $0x598] sm:$0xff]
    %v555 = vld [vmem:[#allocation8 + $0x5a0] sm:$0xff]
    %v556 = vld [vmem:[#allocation8 + $0x5a8] sm:$0xff]
    %v557 = vld [vmem:[#allocation8 + $0x5b0] sm:$0xff]
    %v558 = vld [vmem:[#allocation8 + $0x5b8] sm:$0xff]
    %v559 = vld [vmem:[#allocation8 + $0x5c0] sm:$0xff]
    %v560 = vld [vmem:[#allocation8 + $0x5c8] sm:$0xff]
    %v561 = vld [vmem:[#allocation8 + $0x5d0] sm:$0xff]
    %v562 = vld [vmem:[#allocation8 + $0x5d8] sm:$0xff]
    %v563 = vld [vmem:[#allocation8 + $0x5e0] sm:$0xff]
    %v564 = vld [vmem:[#allocation8 + $0x5e8] sm:$0xff]
    %v565 = vld [vmem:[#allocation8 + $0x5f0] sm:$0xff]
    %v566 = vld [vmem:[#allocation8 + $0x5f8] sm:$0xff]
    %v567 = vld [vmem:[#allocation8 + $0x600] sm:$0xff]
    %v568 = vld [vmem:[#allocation8 + $0x608] sm:$0xff]
    %v569 = vld [vmem:[#allocation8 + $0x610] sm:$0xff]
    %v570 = vld [vmem:[#allocation8 + $0x618] sm:$0xff]
    %v571 = vld [vmem:[#allocation8 + $0x620] sm:$0xff]
    %v572 = vld [vmem:[#allocation8 + $0x628] sm:$0xff]
    %v573 = vld [vmem:[#allocation8 + $0x630] sm:$0xff]
    %v574 = vld [vmem:[#allocation8 + $0x638] sm:$0xff]
    %v575 = vld [vmem:[#allocation8 + $0x640] sm:$0xff]
    %v576 = vld [vmem:[#allocation8 + $0x648] sm:$0xff]
    %v577 = vld [vmem:[#allocation8 + $0x650] sm:$0xff]
    %v578 = vld [vmem:[#allocation8 + $0x658] sm:$0xff]
    %v579 = vld [vmem:[#allocation8 + $0x660] sm:$0xff]
    %v580 = vld [vmem:[#allocation8 + $0x668] sm:$0xff]
    %v581 = vld [vmem:[#allocation8 + $0x670] sm:$0xff]
    %v582 = vld [vmem:[#allocation8 + $0x678] sm:$0xff]
    %v583 = vld [vmem:[#allocation8 + $0x680] sm:$0xff]
    %v584 = vld [vmem:[#allocation8 + $0x688] sm:$0xff]
    %v585 = vld [vmem:[#allocation8 + $0x690] sm:$0xff]
    %v586 = vld [vmem:[#allocation8 + $0x698] sm:$0xff]
    %v587 = vld [vmem:[#allocation8 + $0x6a0] sm:$0xff]
    %v588 = vld [vmem:[#allocation8 + $0x6a8] sm:$0xff]
    %v589 = vld [vmem:[#allocation8 + $0x6b0] sm:$0xff]
    %v590 = vld [vmem:[#allocation8 + $0x6b8] sm:$0xff]
    %v591 = vld [vmem:[#allocation8 + $0x6c0] sm:$0xff]
    %v592 = vld [vmem:[#allocation8 + $0x6c8] sm:$0xff]
    %v593 = vld [vmem:[#allocation8 + $0x6d0] sm:$0xff]
    %v594 = vld [vmem:[#allocation8 + $0x6d8] sm:$0xff]
    %v595 = vld [vmem:[#allocation8 + $0x6e0] sm:$0xff]
    %v596 = vld [vmem:[#allocation8 + $0x6e8] sm:$0xff]
    %v597 = vld [vmem:[#allocation8 + $0x6f0] sm:$0xff]
    %v598 = vld [vmem:[#allocation8 + $0x6f8] sm:$0xff]
    %v599 = vld [vmem:[#allocation8 + $0x700] sm:$0xff]
    %v600 = vld [vmem:[#allocation8 + $0x708] sm:$0xff]
    %v601 = vld [vmem:[#allocation8 + $0x710] sm:$0xff]
    %v602 = vld [vmem:[#allocation8 + $0x718] sm:$0xff]
    %v603 = vld [vmem:[#allocation8 + $0x720] sm:$0xff]
    %v604 = vld [vmem:[#allocation8 + $0x728] sm:$0xff]
    %v605 = vld [vmem:[#allocation8 + $0x730] sm:$0xff]
    %v606 = vld [vmem:[#allocation8 + $0x738] sm:$0xff]
    %v607 = vld [vmem:[#allocation8 + $0x740] sm:$0xff]
    %v608 = vld [vmem:[#allocation8 + $0x748] sm:$0xff]
    %v609 = vld [vmem:[#allocation8 + $0x750] sm:$0xff]
    %v610 = vld [vmem:[#allocation8 + $0x758] sm:$0xff]
    %v611 = vld [vmem:[#allocation8 + $0x760] sm:$0xff]
    %v612 = vld [vmem:[#allocation8 + $0x768] sm:$0xff]
    %v613 = vld [vmem:[#allocation8 + $0x770] sm:$0xff]
    %v614 = vld [vmem:[#allocation8 + $0x778] sm:$0xff]
    %v615 = vld [vmem:[#allocation8 + $0x780] sm:$0xff]
    %v616 = vld [vmem:[#allocation8 + $0x788] sm:$0xff]
    %v617 = vld [vmem:[#allocation8 + $0x790] sm:$0xff]
    %v618 = vld [vmem:[#allocation8 + $0x798] sm:$0xff]
    %v619 = vld [vmem:[#allocation8 + $0x7a0] sm:$0xff]
    %v620 = vld [vmem:[#allocation8 + $0x7a8] sm:$0xff]
    %v621 = vld [vmem:[#allocation8 + $0x7b0] sm:$0xff]
    %v622 = vld [vmem:[#allocation8 + $0x7b8] sm:$0xff]
    %v623 = vld [vmem:[#allocation8 + $0x7c0] sm:$0xff]
    %v624 = vld [vmem:[#allocation8 + $0x7c8] sm:$0xff]
    %v625 = vld [vmem:[#allocation8 + $0x7d0] sm:$0xff]
    %v626 = vld [vmem:[#allocation8 + $0x7d8] sm:$0xff]
    %v627 = vld [vmem:[#allocation8 + $0x7e0] sm:$0xff]
    %v628 = vld [vmem:[#allocation8 + $0x7e8] sm:$0xff]
    %v629 = vld [vmem:[#allocation8 + $0x7f0] sm:$0xff]
    %v630 = vld [vmem:[#allocation8 + $0x7f8] sm:$0xff]
    %v631 = vld [vmem:[#allocation10] sm:$0xf]
    %v633 = vperm.slane %v631, 0
    %v634 = vperm.slane %v631, 1
    %v635 = vperm.slane %v631, 2
    %v636 = vperm.slane %v631, 3
    %v897 = vunpack.c.l.b16 %v375
    %v898 = vunpack.c.h.b16 %v375
    %v899 = vunpack.c.l.b16 %v376
    %v900 = vunpack.c.h.b16 %v376
    %v901 = vunpack.c.l.b16 %v377
    %v902 = vunpack.c.h.b16 %v377
    %v903 = vunpack.c.l.b16 %v378
    %v904 = vunpack.c.h.b16 %v378
    %v905 = vunpack.c.l.b16 %v379
    %v906 = vunpack.c.h.b16 %v379
    %v907 = vunpack.c.l.b16 %v380
    %v908 = vunpack.c.h.b16 %v380
    %v909 = vunpack.c.l.b16 %v381
    %v910 = vunpack.c.h.b16 %v381
    %v911 = vunpack.c.l.b16 %v382
    %v912 = vunpack.c.h.b16 %v382
    %v913 = vunpack.c.l.b16 %v383
    %v914 = vunpack.c.h.b16 %v383
    %v915 = vunpack.c.l.b16 %v384
    %v916 = vunpack.c.h.b16 %v384
    %v917 = vunpack.c.l.b16 %v385
    %v918 = vunpack.c.h.b16 %v385
    %v919 = vunpack.c.l.b16 %v386
    %v920 = vunpack.c.h.b16 %v386
    %v921 = vunpack.c.l.b16 %v387
    %v922 = vunpack.c.h.b16 %v387
    %v923 = vunpack.c.l.b16 %v388
    %v924 = vunpack.c.h.b16 %v388
    %v925 = vunpack.c.l.b16 %v389
    %v926 = vunpack.c.h.b16 %v389
    %v927 = vunpack.c.l.b16 %v390
    %v928 = vunpack.c.h.b16 %v390
    %v929 = vunpack.c.l.b16 %v391
    %v930 = vunpack.c.h.b16 %v391
    %v931 = vunpack.c.l.b16 %v392
    %v932 = vunpack.c.h.b16 %v392
    %v933 = vunpack.c.l.b16 %v393
    %v934 = vunpack.c.h.b16 %v393
    %v935 = vunpack.c.l.b16 %v394
    %v936 = vunpack.c.h.b16 %v394
    %v937 = vunpack.c.l.b16 %v395
    %v938 = vunpack.c.h.b16 %v395
    %v939 = vunpack.c.l.b16 %v396
    %v940 = vunpack.c.h.b16 %v396
    %v941 = vunpack.c.l.b16 %v397
    %v942 = vunpack.c.h.b16 %v397
    %v943 = vunpack.c.l.b16 %v398
    %v944 = vunpack.c.h.b16 %v398
    %v945 = vunpack.c.l.b16 %v399
    %v946 = vunpack.c.h.b16 %v399
    %v947 = vunpack.c.l.b16 %v400
    %v948 = vunpack.c.h.b16 %v400
    %v949 = vunpack.c.l.b16 %v401
    %v950 = vunpack.c.h.b16 %v401
    %v951 = vunpack.c.l.b16 %v402
    %v952 = vunpack.c.h.b16 %v402
    %v953 = vunpack.c.l.b16 %v403
    %v954 = vunpack.c.h.b16 %v403
    %v955 = vunpack.c.l.b16 %v404
    %v956 = vunpack.c.h.b16 %v404
    %v957 = vunpack.c.l.b16 %v405
    %v958 = vunpack.c.h.b16 %v405
    %v959 = vunpack.c.l.b16 %v406
    %v960 = vunpack.c.h.b16 %v406
    %v961 = vunpack.c.l.b16 %v407
    %v962 = vunpack.c.h.b16 %v407
    %v963 = vunpack.c.l.b16 %v408
    %v964 = vunpack.c.h.b16 %v408
    %v965 = vunpack.c.l.b16 %v409
    %v966 = vunpack.c.h.b16 %v409
    %v967 = vunpack.c.l.b16 %v410
    %v968 = vunpack.c.h.b16 %v410
    %v969 = vunpack.c.l.b16 %v411
    %v970 = vunpack.c.h.b16 %v411
    %v971 = vunpack.c.l.b16 %v412
    %v972 = vunpack.c.h.b16 %v412
    %v973 = vunpack.c.l.b16 %v413
    %v974 = vunpack.c.h.b16 %v413
    %v975 = vunpack.c.l.b16 %v414
    %v976 = vunpack.c.h.b16 %v414
    %v977 = vunpack.c.l.b16 %v415
    %v978 = vunpack.c.h.b16 %v415
    %v979 = vunpack.c.l.b16 %v416
    %v980 = vunpack.c.h.b16 %v416
    %v981 = vunpack.c.l.b16 %v417
    %v982 = vunpack.c.h.b16 %v417
    %v983 = vunpack.c.l.b16 %v418
    %v984 = vunpack.c.h.b16 %v418
    %v985 = vunpack.c.l.b16 %v419
    %v986 = vunpack.c.h.b16 %v419
    %v987 = vunpack.c.l.b16 %v420
    %v988 = vunpack.c.h.b16 %v420
    %v989 = vunpack.c.l.b16 %v421
    %v990 = vunpack.c.h.b16 %v421
    %v991 = vunpack.c.l.b16 %v422
    %v992 = vunpack.c.h.b16 %v422
    %v993 = vunpack.c.l.b16 %v423
    %v994 = vunpack.c.h.b16 %v423
    %v995 = vunpack.c.l.b16 %v424
    %v996 = vunpack.c.h.b16 %v424
    %v997 = vunpack.c.l.b16 %v425
    %v998 = vunpack.c.h.b16 %v425
    %v999 = vunpack.c.l.b16 %v426
    %v1000 = vunpack.c.h.b16 %v426
    %v1001 = vunpack.c.l.b16 %v427
    %v1002 = vunpack.c.h.b16 %v427
    %v1003 = vunpack.c.l.b16 %v428
    %v1004 = vunpack.c.h.b16 %v428
    %v1005 = vunpack.c.l.b16 %v429
    %v1006 = vunpack.c.h.b16 %v429
    %v1007 = vunpack.c.l.b16 %v430
    %v1008 = vunpack.c.h.b16 %v430
    %v1009 = vunpack.c.l.b16 %v431
    %v1010 = vunpack.c.h.b16 %v431
    %v1011 = vunpack.c.l.b16 %v432
    %v1012 = vunpack.c.h.b16 %v432
    %v1013 = vunpack.c.l.b16 %v433
    %v1014 = vunpack.c.h.b16 %v433
    %v1015 = vunpack.c.l.b16 %v434
    %v1016 = vunpack.c.h.b16 %v434
    %v1017 = vunpack.c.l.b16 %v435
    %v1018 = vunpack.c.h.b16 %v435
    %v1019 = vunpack.c.l.b16 %v436
    %v1020 = vunpack.c.h.b16 %v436
    %v1021 = vunpack.c.l.b16 %v437
    %v1022 = vunpack.c.h.b16 %v437
    %v1023 = vunpack.c.l.b16 %v438
    %v1024 = vunpack.c.h.b16 %v438
    %v1025 = vunpack.c.l.b16 %v439
    %v1026 = vunpack.c.h.b16 %v439
    %v1027 = vunpack.c.l.b16 %v440
    %v1028 = vunpack.c.h.b16 %v440
    %v1029 = vunpack.c.l.b16 %v441
    %v1030 = vunpack.c.h.b16 %v441
    %v1031 = vunpack.c.l.b16 %v442
    %v1032 = vunpack.c.h.b16 %v442
    %v1033 = vunpack.c.l.b16 %v443
    %v1034 = vunpack.c.h.b16 %v443
    %v1035 = vunpack.c.l.b16 %v444
    %v1036 = vunpack.c.h.b16 %v444
    %v1037 = vunpack.c.l.b16 %v445
    %v1038 = vunpack.c.h.b16 %v445
    %v1039 = vunpack.c.l.b16 %v446
    %v1040 = vunpack.c.h.b16 %v446
    %v1041 = vunpack.c.l.b16 %v447
    %v1042 = vunpack.c.h.b16 %v447
    %v1043 = vunpack.c.l.b16 %v448
    %v1044 = vunpack.c.h.b16 %v448
    %v1045 = vunpack.c.l.b16 %v449
    %v1046 = vunpack.c.h.b16 %v449
    %v1047 = vunpack.c.l.b16 %v450
    %v1048 = vunpack.c.h.b16 %v450
    %v1049 = vunpack.c.l.b16 %v451
    %v1050 = vunpack.c.h.b16 %v451
    %v1051 = vunpack.c.l.b16 %v452
    %v1052 = vunpack.c.h.b16 %v452
    %v1053 = vunpack.c.l.b16 %v453
    %v1054 = vunpack.c.h.b16 %v453
    %v1055 = vunpack.c.l.b16 %v454
    %v1056 = vunpack.c.h.b16 %v454
    %v1057 = vunpack.c.l.b16 %v455
    %v1058 = vunpack.c.h.b16 %v455
    %v1059 = vunpack.c.l.b16 %v456
    %v1060 = vunpack.c.h.b16 %v456
    %v1061 = vunpack.c.l.b16 %v457
    %v1062 = vunpack.c.h.b16 %v457
    %v1063 = vunpack.c.l.b16 %v458
    %v1064 = vunpack.c.h.b16 %v458
    %v1065 = vunpack.c.l.b16 %v459
    %v1066 = vunpack.c.h.b16 %v459
    %v1067 = vunpack.c.l.b16 %v460
    %v1068 = vunpack.c.h.b16 %v460
    %v1069 = vunpack.c.l.b16 %v461
    %v1070 = vunpack.c.h.b16 %v461
    %v1071 = vunpack.c.l.b16 %v462
    %v1072 = vunpack.c.h.b16 %v462
    %v1073 = vunpack.c.l.b16 %v463
    %v1074 = vunpack.c.h.b16 %v463
    %v1075 = vunpack.c.l.b16 %v464
    %v1076 = vunpack.c.h.b16 %v464
    %v1077 = vunpack.c.l.b16 %v465
    %v1078 = vunpack.c.h.b16 %v465
    %v1079 = vunpack.c.l.b16 %v466
    %v1080 = vunpack.c.h.b16 %v466
    %v1081 = vunpack.c.l.b16 %v467
    %v1082 = vunpack.c.h.b16 %v467
    %v1083 = vunpack.c.l.b16 %v468
    %v1084 = vunpack.c.h.b16 %v468
    %v1085 = vunpack.c.l.b16 %v469
    %v1086 = vunpack.c.h.b16 %v469
    %v1087 = vunpack.c.l.b16 %v470
    %v1088 = vunpack.c.h.b16 %v470
    %v1089 = vunpack.c.l.b16 %v471
    %v1090 = vunpack.c.h.b16 %v471
    %v1091 = vunpack.c.l.b16 %v472
    %v1092 = vunpack.c.h.b16 %v472
    %v1093 = vunpack.c.l.b16 %v473
    %v1094 = vunpack.c.h.b16 %v473
    %v1095 = vunpack.c.l.b16 %v474
    %v1096 = vunpack.c.h.b16 %v474
    %v1097 = vunpack.c.l.b16 %v475
    %v1098 = vunpack.c.h.b16 %v475
    %v1099 = vunpack.c.l.b16 %v476
    %v1100 = vunpack.c.h.b16 %v476
    %v1101 = vunpack.c.l.b16 %v477
    %v1102 = vunpack.c.h.b16 %v477
    %v1103 = vunpack.c.l.b16 %v478
    %v1104 = vunpack.c.h.b16 %v478
    %v1105 = vunpack.c.l.b16 %v479
    %v1106 = vunpack.c.h.b16 %v479
    %v1107 = vunpack.c.l.b16 %v480
    %v1108 = vunpack.c.h.b16 %v480
    %v1109 = vunpack.c.l.b16 %v481
    %v1110 = vunpack.c.h.b16 %v481
    %v1111 = vunpack.c.l.b16 %v482
    %v1112 = vunpack.c.h.b16 %v482
    %v1113 = vunpack.c.l.b16 %v483
    %v1114 = vunpack.c.h.b16 %v483
    %v1115 = vunpack.c.l.b16 %v484
    %v1116 = vunpack.c.h.b16 %v484
    %v1117 = vunpack.c.l.b16 %v485
    %v1118 = vunpack.c.h.b16 %v485
    %v1119 = vunpack.c.l.b16 %v486
    %v1120 = vunpack.c.h.b16 %v486
    %v1121 = vunpack.c.l.b16 %v487
    %v1122 = vunpack.c.h.b16 %v487
    %v1123 = vunpack.c.l.b16 %v488
    %v1124 = vunpack.c.h.b16 %v488
    %v1125 = vunpack.c.l.b16 %v489
    %v1126 = vunpack.c.h.b16 %v489
    %v1127 = vunpack.c.l.b16 %v490
    %v1128 = vunpack.c.h.b16 %v490
    %v1129 = vunpack.c.l.b16 %v491
    %v1130 = vunpack.c.h.b16 %v491
    %v1131 = vunpack.c.l.b16 %v492
    %v1132 = vunpack.c.h.b16 %v492
    %v1133 = vunpack.c.l.b16 %v493
    %v1134 = vunpack.c.h.b16 %v493
    %v1135 = vunpack.c.l.b16 %v494
    %v1136 = vunpack.c.h.b16 %v494
    %v1137 = vunpack.c.l.b16 %v495
    %v1138 = vunpack.c.h.b16 %v495
    %v1139 = vunpack.c.l.b16 %v496
    %v1140 = vunpack.c.h.b16 %v496
    %v1141 = vunpack.c.l.b16 %v497
    %v1142 = vunpack.c.h.b16 %v497
    %v1143 = vunpack.c.l.b16 %v498
    %v1144 = vunpack.c.h.b16 %v498
    %v1145 = vunpack.c.l.b16 %v499
    %v1146 = vunpack.c.h.b16 %v499
    %v1147 = vunpack.c.l.b16 %v500
    %v1148 = vunpack.c.h.b16 %v500
    %v1149 = vunpack.c.l.b16 %v501
    %v1150 = vunpack.c.h.b16 %v501
    %v1151 = vunpack.c.l.b16 %v502
    %v1152 = vunpack.c.h.b16 %v502
    %v1153 = vunpack.c.l.b16 %v503
    %v1154 = vunpack.c.h.b16 %v503
    %v1155 = vunpack.c.l.b16 %v504
    %v1156 = vunpack.c.h.b16 %v504
    %v1157 = vunpack.c.l.b16 %v505
    %v1158 = vunpack.c.h.b16 %v505
    %v1159 = vunpack.c.l.b16 %v506
    %v1160 = vunpack.c.h.b16 %v506
    %v1161 = vunpack.c.l.b16 %v507
    %v1162 = vunpack.c.h.b16 %v507
    %v1163 = vunpack.c.l.b16 %v508
    %v1164 = vunpack.c.h.b16 %v508
    %v1165 = vunpack.c.l.b16 %v509
    %v1166 = vunpack.c.h.b16 %v509
    %v1167 = vunpack.c.l.b16 %v510
    %v1168 = vunpack.c.h.b16 %v510
    %v1169 = vunpack.c.l.b16 %v511
    %v1170 = vunpack.c.h.b16 %v511
    %v1171 = vunpack.c.l.b16 %v512
    %v1172 = vunpack.c.h.b16 %v512
    %v1173 = vunpack.c.l.b16 %v513
    %v1174 = vunpack.c.h.b16 %v513
    %v1175 = vunpack.c.l.b16 %v514
    %v1176 = vunpack.c.h.b16 %v514
    %v1177 = vunpack.c.l.b16 %v515
    %v1178 = vunpack.c.h.b16 %v515
    %v1179 = vunpack.c.l.b16 %v516
    %v1180 = vunpack.c.h.b16 %v516
    %v1181 = vunpack.c.l.b16 %v517
    %v1182 = vunpack.c.h.b16 %v517
    %v1183 = vunpack.c.l.b16 %v518
    %v1184 = vunpack.c.h.b16 %v518
    %v1185 = vunpack.c.l.b16 %v519
    %v1186 = vunpack.c.h.b16 %v519
    %v1187 = vunpack.c.l.b16 %v520
    %v1188 = vunpack.c.h.b16 %v520
    %v1189 = vunpack.c.l.b16 %v521
    %v1190 = vunpack.c.h.b16 %v521
    %v1191 = vunpack.c.l.b16 %v522
    %v1192 = vunpack.c.h.b16 %v522
    %v1193 = vunpack.c.l.b16 %v523
    %v1194 = vunpack.c.h.b16 %v523
    %v1195 = vunpack.c.l.b16 %v524
    %v1196 = vunpack.c.h.b16 %v524
    %v1197 = vunpack.c.l.b16 %v525
    %v1198 = vunpack.c.h.b16 %v525
    %v1199 = vunpack.c.l.b16 %v526
    %v1200 = vunpack.c.h.b16 %v526
    %v1201 = vunpack.c.l.b16 %v527
    %v1202 = vunpack.c.h.b16 %v527
    %v1203 = vunpack.c.l.b16 %v528
    %v1204 = vunpack.c.h.b16 %v528
    %v1205 = vunpack.c.l.b16 %v529
    %v1206 = vunpack.c.h.b16 %v529
    %v1207 = vunpack.c.l.b16 %v530
    %v1208 = vunpack.c.h.b16 %v530
    %v1209 = vunpack.c.l.b16 %v531
    %v1210 = vunpack.c.h.b16 %v531
    %v1211 = vunpack.c.l.b16 %v532
    %v1212 = vunpack.c.h.b16 %v532
    %v1213 = vunpack.c.l.b16 %v533
    %v1214 = vunpack.c.h.b16 %v533
    %v1215 = vunpack.c.l.b16 %v534
    %v1216 = vunpack.c.h.b16 %v534
    %v1217 = vunpack.c.l.b16 %v535
    %v1218 = vunpack.c.h.b16 %v535
    %v1219 = vunpack.c.l.b16 %v536
    %v1220 = vunpack.c.h.b16 %v536
    %v1221 = vunpack.c.l.b16 %v537
    %v1222 = vunpack.c.h.b16 %v537
    %v1223 = vunpack.c.l.b16 %v538
    %v1224 = vunpack.c.h.b16 %v538
    %v1225 = vunpack.c.l.b16 %v539
    %v1226 = vunpack.c.h.b16 %v539
    %v1227 = vunpack.c.l.b16 %v540
    %v1228 = vunpack.c.h.b16 %v540
    %v1229 = vunpack.c.l.b16 %v541
    %v1230 = vunpack.c.h.b16 %v541
    %v1231 = vunpack.c.l.b16 %v542
    %v1232 = vunpack.c.h.b16 %v542
    %v1233 = vunpack.c.l.b16 %v543
    %v1234 = vunpack.c.h.b16 %v543
    %v1235 = vunpack.c.l.b16 %v544
    %v1236 = vunpack.c.h.b16 %v544
    %v1237 = vunpack.c.l.b16 %v545
    %v1238 = vunpack.c.h.b16 %v545
    %v1239 = vunpack.c.l.b16 %v546
    %v1240 = vunpack.c.h.b16 %v546
    %v1241 = vunpack.c.l.b16 %v547
    %v1242 = vunpack.c.h.b16 %v547
    %v1243 = vunpack.c.l.b16 %v548
    %v1244 = vunpack.c.h.b16 %v548
    %v1245 = vunpack.c.l.b16 %v549
    %v1246 = vunpack.c.h.b16 %v549
    %v1247 = vunpack.c.l.b16 %v550
    %v1248 = vunpack.c.h.b16 %v550
    %v1249 = vunpack.c.l.b16 %v551
    %v1250 = vunpack.c.h.b16 %v551
    %v1251 = vunpack.c.l.b16 %v552
    %v1252 = vunpack.c.h.b16 %v552
    %v1253 = vunpack.c.l.b16 %v553
    %v1254 = vunpack.c.h.b16 %v553
    %v1255 = vunpack.c.l.b16 %v554
    %v1256 = vunpack.c.h.b16 %v554
    %v1257 = vunpack.c.l.b16 %v555
    %v1258 = vunpack.c.h.b16 %v555
    %v1259 = vunpack.c.l.b16 %v556
    %v1260 = vunpack.c.h.b16 %v556
    %v1261 = vunpack.c.l.b16 %v557
    %v1262 = vunpack.c.h.b16 %v557
    %v1263 = vunpack.c.l.b16 %v558
    %v1264 = vunpack.c.h.b16 %v558
    %v1265 = vunpack.c.l.b16 %v559
    %v1266 = vunpack.c.h.b16 %v559
    %v1267 = vunpack.c.l.b16 %v560
    %v1268 = vunpack.c.h.b16 %v560
    %v1269 = vunpack.c.l.b16 %v561
    %v1270 = vunpack.c.h.b16 %v561
    %v1271 = vunpack.c.l.b16 %v562
    %v1272 = vunpack.c.h.b16 %v562
    %v1273 = vunpack.c.l.b16 %v563
    %v1274 = vunpack.c.h.b16 %v563
    %v1275 = vunpack.c.l.b16 %v564
    %v1276 = vunpack.c.h.b16 %v564
    %v1277 = vunpack.c.l.b16 %v565
    %v1278 = vunpack.c.h.b16 %v565
    %v1279 = vunpack.c.l.b16 %v566
    %v1280 = vunpack.c.h.b16 %v566
    %v1281 = vunpack.c.l.b16 %v567
    %v1282 = vunpack.c.h.b16 %v567
    %v1283 = vunpack.c.l.b16 %v568
    %v1284 = vunpack.c.h.b16 %v568
    %v1285 = vunpack.c.l.b16 %v569
    %v1286 = vunpack.c.h.b16 %v569
    %v1287 = vunpack.c.l.b16 %v570
    %v1288 = vunpack.c.h.b16 %v570
    %v1289 = vunpack.c.l.b16 %v571
    %v1290 = vunpack.c.h.b16 %v571
    %v1291 = vunpack.c.l.b16 %v572
    %v1292 = vunpack.c.h.b16 %v572
    %v1293 = vunpack.c.l.b16 %v573
    %v1294 = vunpack.c.h.b16 %v573
    %v1295 = vunpack.c.l.b16 %v574
    %v1296 = vunpack.c.h.b16 %v574
    %v1297 = vunpack.c.l.b16 %v575
    %v1298 = vunpack.c.h.b16 %v575
    %v1299 = vunpack.c.l.b16 %v576
    %v1300 = vunpack.c.h.b16 %v576
    %v1301 = vunpack.c.l.b16 %v577
    %v1302 = vunpack.c.h.b16 %v577
    %v1303 = vunpack.c.l.b16 %v578
    %v1304 = vunpack.c.h.b16 %v578
    %v1305 = vunpack.c.l.b16 %v579
    %v1306 = vunpack.c.h.b16 %v579
    %v1307 = vunpack.c.l.b16 %v580
    %v1308 = vunpack.c.h.b16 %v580
    %v1309 = vunpack.c.l.b16 %v581
    %v1310 = vunpack.c.h.b16 %v581
    %v1311 = vunpack.c.l.b16 %v582
    %v1312 = vunpack.c.h.b16 %v582
    %v1313 = vunpack.c.l.b16 %v583
    %v1314 = vunpack.c.h.b16 %v583
    %v1315 = vunpack.c.l.b16 %v584
    %v1316 = vunpack.c.h.b16 %v584
    %v1317 = vunpack.c.l.b16 %v585
    %v1318 = vunpack.c.h.b16 %v585
    %v1319 = vunpack.c.l.b16 %v586
    %v1320 = vunpack.c.h.b16 %v586
    %v1321 = vunpack.c.l.b16 %v587
    %v1322 = vunpack.c.h.b16 %v587
    %v1323 = vunpack.c.l.b16 %v588
    %v1324 = vunpack.c.h.b16 %v588
    %v1325 = vunpack.c.l.b16 %v589
    %v1326 = vunpack.c.h.b16 %v589
    %v1327 = vunpack.c.l.b16 %v590
    %v1328 = vunpack.c.h.b16 %v590
    %v1329 = vunpack.c.l.b16 %v591
    %v1330 = vunpack.c.h.b16 %v591
    %v1331 = vunpack.c.l.b16 %v592
    %v1332 = vunpack.c.h.b16 %v592
    %v1333 = vunpack.c.l.b16 %v593
    %v1334 = vunpack.c.h.b16 %v593
    %v1335 = vunpack.c.l.b16 %v594
    %v1336 = vunpack.c.h.b16 %v594
    %v1337 = vunpack.c.l.b16 %v595
    %v1338 = vunpack.c.h.b16 %v595
    %v1339 = vunpack.c.l.b16 %v596
    %v1340 = vunpack.c.h.b16 %v596
    %v1341 = vunpack.c.l.b16 %v597
    %v1342 = vunpack.c.h.b16 %v597
    %v1343 = vunpack.c.l.b16 %v598
    %v1344 = vunpack.c.h.b16 %v598
    %v1345 = vunpack.c.l.b16 %v599
    %v1346 = vunpack.c.h.b16 %v599
    %v1347 = vunpack.c.l.b16 %v600
    %v1348 = vunpack.c.h.b16 %v600
    %v1349 = vunpack.c.l.b16 %v601
    %v1350 = vunpack.c.h.b16 %v601
    %v1351 = vunpack.c.l.b16 %v602
    %v1352 = vunpack.c.h.b16 %v602
    %v1353 = vunpack.c.l.b16 %v603
    %v1354 = vunpack.c.h.b16 %v603
    %v1355 = vunpack.c.l.b16 %v604
    %v1356 = vunpack.c.h.b16 %v604
    %v1357 = vunpack.c.l.b16 %v605
    %v1358 = vunpack.c.h.b16 %v605
    %v1359 = vunpack.c.l.b16 %v606
    %v1360 = vunpack.c.h.b16 %v606
    %v1361 = vunpack.c.l.b16 %v607
    %v1362 = vunpack.c.h.b16 %v607
    %v1363 = vunpack.c.l.b16 %v608
    %v1364 = vunpack.c.h.b16 %v608
    %v1365 = vunpack.c.l.b16 %v609
    %v1366 = vunpack.c.h.b16 %v609
    %v1367 = vunpack.c.l.b16 %v610
    %v1368 = vunpack.c.h.b16 %v610
    %v1369 = vunpack.c.l.b16 %v611
    %v1370 = vunpack.c.h.b16 %v611
    %v1371 = vunpack.c.l.b16 %v612
    %v1372 = vunpack.c.h.b16 %v612
    %v1373 = vunpack.c.l.b16 %v613
    %v1374 = vunpack.c.h.b16 %v613
    %v1375 = vunpack.c.l.b16 %v614
    %v1376 = vunpack.c.h.b16 %v614
    %v1377 = vunpack.c.l.b16 %v615
    %v1378 = vunpack.c.h.b16 %v615
    %v1379 = vunpack.c.l.b16 %v616
    %v1380 = vunpack.c.h.b16 %v616
    %v1381 = vunpack.c.l.b16 %v617
    %v1382 = vunpack.c.h.b16 %v617
    %v1383 = vunpack.c.l.b16 %v618
    %v1384 = vunpack.c.h.b16 %v618
    %v1385 = vunpack.c.l.b16 %v619
    %v1386 = vunpack.c.h.b16 %v619
    %v1387 = vunpack.c.l.b16 %v620
    %v1388 = vunpack.c.h.b16 %v620
    %v1389 = vunpack.c.l.b16 %v621
    %v1390 = vunpack.c.h.b16 %v621
    %v1391 = vunpack.c.l.b16 %v622
    %v1392 = vunpack.c.h.b16 %v622
    %v1393 = vunpack.c.l.b16 %v623
    %v1394 = vunpack.c.h.b16 %v623
    %v1395 = vunpack.c.l.b16 %v624
    %v1396 = vunpack.c.h.b16 %v624
    %v1397 = vunpack.c.l.b16 %v625
    %v1398 = vunpack.c.h.b16 %v625
    %v1399 = vunpack.c.l.b16 %v626
    %v1400 = vunpack.c.h.b16 %v626
    %v1401 = vunpack.c.l.b16 %v627
    %v1402 = vunpack.c.h.b16 %v627
    %v1403 = vunpack.c.l.b16 %v628
    %v1404 = vunpack.c.h.b16 %v628
    %v1405 = vunpack.c.l.b16 %v629
    %v1406 = vunpack.c.h.b16 %v629
    %v1407 = vunpack.c.l.b16 %v630
    %v1408 = vunpack.c.h.b16 %v630
    %v1409 = vpack.c.b16 %v901, %v897
    %v1410 = vpack.c.b16 %v902, %v898
    %v1411 = vpack.c.b16 %v903, %v899
    %v1412 = vpack.c.b16 %v904, %v900
    %v1413 = vpack.c.b16 %v909, %v905
    %v1414 = vpack.c.b16 %v910, %v906
    %v1415 = vpack.c.b16 %v911, %v907
    %v1416 = vpack.c.b16 %v912, %v908
    %v1417 = vpack.c.b16 %v917, %v913
    %v1418 = vpack.c.b16 %v918, %v914
    %v1419 = vpack.c.b16 %v919, %v915
    %v1420 = vpack.c.b16 %v920, %v916
    %v1421 = vpack.c.b16 %v925, %v921
    %v1422 = vpack.c.b16 %v926, %v922
    %v1423 = vpack.c.b16 %v927, %v923
    %v1424 = vpack.c.b16 %v928, %v924
    %v1425 = vpack.c.b16 %v933, %v929
    %v1426 = vpack.c.b16 %v934, %v930
    %v1427 = vpack.c.b16 %v935, %v931
    %v1428 = vpack.c.b16 %v936, %v932
    %v1429 = vpack.c.b16 %v941, %v937
    %v1430 = vpack.c.b16 %v942, %v938
    %v1431 = vpack.c.b16 %v943, %v939
    %v1432 = vpack.c.b16 %v944, %v940
    %v1433 = vpack.c.b16 %v949, %v945
    %v1434 = vpack.c.b16 %v950, %v946
    %v1435 = vpack.c.b16 %v951, %v947
    %v1436 = vpack.c.b16 %v952, %v948
    %v1437 = vpack.c.b16 %v957, %v953
    %v1438 = vpack.c.b16 %v958, %v954
    %v1439 = vpack.c.b16 %v959, %v955
    %v1440 = vpack.c.b16 %v960, %v956
    %v1441 = vpack.c.b16 %v965, %v961
    %v1442 = vpack.c.b16 %v966, %v962
    %v1443 = vpack.c.b16 %v967, %v963
    %v1444 = vpack.c.b16 %v968, %v964
    %v1445 = vpack.c.b16 %v973, %v969
    %v1446 = vpack.c.b16 %v974, %v970
    %v1447 = vpack.c.b16 %v975, %v971
    %v1448 = vpack.c.b16 %v976, %v972
    %v1449 = vpack.c.b16 %v981, %v977
    %v1450 = vpack.c.b16 %v982, %v978
    %v1451 = vpack.c.b16 %v983, %v979
    %v1452 = vpack.c.b16 %v984, %v980
    %v1453 = vpack.c.b16 %v989, %v985
    %v1454 = vpack.c.b16 %v990, %v986
    %v1455 = vpack.c.b16 %v991, %v987
    %v1456 = vpack.c.b16 %v992, %v988
    %v1457 = vpack.c.b16 %v997, %v993
    %v1458 = vpack.c.b16 %v998, %v994
    %v1459 = vpack.c.b16 %v999, %v995
    %v1460 = vpack.c.b16 %v1000, %v996
    %v1461 = vpack.c.b16 %v1005, %v1001
    %v1462 = vpack.c.b16 %v1006, %v1002
    %v1463 = vpack.c.b16 %v1007, %v1003
    %v1464 = vpack.c.b16 %v1008, %v1004
    %v1465 = vpack.c.b16 %v1013, %v1009
    %v1466 = vpack.c.b16 %v1014, %v1010
    %v1467 = vpack.c.b16 %v1015, %v1011
    %v1468 = vpack.c.b16 %v1016, %v1012
    %v1469 = vpack.c.b16 %v1021, %v1017
    %v1470 = vpack.c.b16 %v1022, %v1018
    %v1471 = vpack.c.b16 %v1023, %v1019
    %v1472 = vpack.c.b16 %v1024, %v1020
    %v1473 = vpack.c.b16 %v1029, %v1025
    %v1474 = vpack.c.b16 %v1030, %v1026
    %v1475 = vpack.c.b16 %v1031, %v1027
    %v1476 = vpack.c.b16 %v1032, %v1028
    %v1477 = vpack.c.b16 %v1037, %v1033
    %v1478 = vpack.c.b16 %v1038, %v1034
    %v1479 = vpack.c.b16 %v1039, %v1035
    %v1480 = vpack.c.b16 %v1040, %v1036
    %v1481 = vpack.c.b16 %v1045, %v1041
    %v1482 = vpack.c.b16 %v1046, %v1042
    %v1483 = vpack.c.b16 %v1047, %v1043
    %v1484 = vpack.c.b16 %v1048, %v1044
    %v1485 = vpack.c.b16 %v1053, %v1049
    %v1486 = vpack.c.b16 %v1054, %v1050
    %v1487 = vpack.c.b16 %v1055, %v1051
    %v1488 = vpack.c.b16 %v1056, %v1052
    %v1489 = vpack.c.b16 %v1061, %v1057
    %v1490 = vpack.c.b16 %v1062, %v1058
    %v1491 = vpack.c.b16 %v1063, %v1059
    %v1492 = vpack.c.b16 %v1064, %v1060
    %v1493 = vpack.c.b16 %v1069, %v1065
    %v1494 = vpack.c.b16 %v1070, %v1066
    %v1495 = vpack.c.b16 %v1071, %v1067
    %v1496 = vpack.c.b16 %v1072, %v1068
    %v1497 = vpack.c.b16 %v1077, %v1073
    %v1498 = vpack.c.b16 %v1078, %v1074
    %v1499 = vpack.c.b16 %v1079, %v1075
    %v1500 = vpack.c.b16 %v1080, %v1076
    %v1501 = vpack.c.b16 %v1085, %v1081
    %v1502 = vpack.c.b16 %v1086, %v1082
    %v1503 = vpack.c.b16 %v1087, %v1083
    %v1504 = vpack.c.b16 %v1088, %v1084
    %v1505 = vpack.c.b16 %v1093, %v1089
    %v1506 = vpack.c.b16 %v1094, %v1090
    %v1507 = vpack.c.b16 %v1095, %v1091
    %v1508 = vpack.c.b16 %v1096, %v1092
    %v1509 = vpack.c.b16 %v1101, %v1097
    %v1510 = vpack.c.b16 %v1102, %v1098
    %v1511 = vpack.c.b16 %v1103, %v1099
    %v1512 = vpack.c.b16 %v1104, %v1100
    %v1513 = vpack.c.b16 %v1109, %v1105
    %v1514 = vpack.c.b16 %v1110, %v1106
    %v1515 = vpack.c.b16 %v1111, %v1107
    %v1516 = vpack.c.b16 %v1112, %v1108
    %v1517 = vpack.c.b16 %v1117, %v1113
    %v1518 = vpack.c.b16 %v1118, %v1114
    %v1519 = vpack.c.b16 %v1119, %v1115
    %v1520 = vpack.c.b16 %v1120, %v1116
    %v1521 = vpack.c.b16 %v1125, %v1121
    %v1522 = vpack.c.b16 %v1126, %v1122
    %v1523 = vpack.c.b16 %v1127, %v1123
    %v1524 = vpack.c.b16 %v1128, %v1124
    %v1525 = vpack.c.b16 %v1133, %v1129
    %v1526 = vpack.c.b16 %v1134, %v1130
    %v1527 = vpack.c.b16 %v1135, %v1131
    %v1528 = vpack.c.b16 %v1136, %v1132
    %v1529 = vpack.c.b16 %v1141, %v1137
    %v1530 = vpack.c.b16 %v1142, %v1138
    %v1531 = vpack.c.b16 %v1143, %v1139
    %v1532 = vpack.c.b16 %v1144, %v1140
    %v1533 = vpack.c.b16 %v1149, %v1145
    %v1534 = vpack.c.b16 %v1150, %v1146
    %v1535 = vpack.c.b16 %v1151, %v1147
    %v1536 = vpack.c.b16 %v1152, %v1148
    %v1537 = vpack.c.b16 %v1157, %v1153
    %v1538 = vpack.c.b16 %v1158, %v1154
    %v1539 = vpack.c.b16 %v1159, %v1155
    %v1540 = vpack.c.b16 %v1160, %v1156
    %v1541 = vpack.c.b16 %v1165, %v1161
    %v1542 = vpack.c.b16 %v1166, %v1162
    %v1543 = vpack.c.b16 %v1167, %v1163
    %v1544 = vpack.c.b16 %v1168, %v1164
    %v1545 = vpack.c.b16 %v1173, %v1169
    %v1546 = vpack.c.b16 %v1174, %v1170
    %v1547 = vpack.c.b16 %v1175, %v1171
    %v1548 = vpack.c.b16 %v1176, %v1172
    %v1549 = vpack.c.b16 %v1181, %v1177
    %v1550 = vpack.c.b16 %v1182, %v1178
    %v1551 = vpack.c.b16 %v1183, %v1179
    %v1552 = vpack.c.b16 %v1184, %v1180
    %v1553 = vpack.c.b16 %v1189, %v1185
    %v1554 = vpack.c.b16 %v1190, %v1186
    %v1555 = vpack.c.b16 %v1191, %v1187
    %v1556 = vpack.c.b16 %v1192, %v1188
    %v1557 = vpack.c.b16 %v1197, %v1193
    %v1558 = vpack.c.b16 %v1198, %v1194
    %v1559 = vpack.c.b16 %v1199, %v1195
    %v1560 = vpack.c.b16 %v1200, %v1196
    %v1561 = vpack.c.b16 %v1205, %v1201
    %v1562 = vpack.c.b16 %v1206, %v1202
    %v1563 = vpack.c.b16 %v1207, %v1203
    %v1564 = vpack.c.b16 %v1208, %v1204
    %v1565 = vpack.c.b16 %v1213, %v1209
    %v1566 = vpack.c.b16 %v1214, %v1210
    %v1567 = vpack.c.b16 %v1215, %v1211
    %v1568 = vpack.c.b16 %v1216, %v1212
    %v1569 = vpack.c.b16 %v1221, %v1217
    %v1570 = vpack.c.b16 %v1222, %v1218
    %v1571 = vpack.c.b16 %v1223, %v1219
    %v1572 = vpack.c.b16 %v1224, %v1220
    %v1573 = vpack.c.b16 %v1229, %v1225
    %v1574 = vpack.c.b16 %v1230, %v1226
    %v1575 = vpack.c.b16 %v1231, %v1227
    %v1576 = vpack.c.b16 %v1232, %v1228
    %v1577 = vpack.c.b16 %v1237, %v1233
    %v1578 = vpack.c.b16 %v1238, %v1234
    %v1579 = vpack.c.b16 %v1239, %v1235
    %v1580 = vpack.c.b16 %v1240, %v1236
    %v1581 = vpack.c.b16 %v1245, %v1241
    %v1582 = vpack.c.b16 %v1246, %v1242
    %v1583 = vpack.c.b16 %v1247, %v1243
    %v1584 = vpack.c.b16 %v1248, %v1244
    %v1585 = vpack.c.b16 %v1253, %v1249
    %v1586 = vpack.c.b16 %v1254, %v1250
    %v1587 = vpack.c.b16 %v1255, %v1251
    %v1588 = vpack.c.b16 %v1256, %v1252
    %v1589 = vpack.c.b16 %v1261, %v1257
    %v1590 = vpack.c.b16 %v1262, %v1258
    %v1591 = vpack.c.b16 %v1263, %v1259
    %v1592 = vpack.c.b16 %v1264, %v1260
    %v1593 = vpack.c.b16 %v1269, %v1265
    %v1594 = vpack.c.b16 %v1270, %v1266
    %v1595 = vpack.c.b16 %v1271, %v1267
    %v1596 = vpack.c.b16 %v1272, %v1268
    %v1597 = vpack.c.b16 %v1277, %v1273
    %v1598 = vpack.c.b16 %v1278, %v1274
    %v1599 = vpack.c.b16 %v1279, %v1275
    %v1600 = vpack.c.b16 %v1280, %v1276
    %v1601 = vpack.c.b16 %v1285, %v1281
    %v1602 = vpack.c.b16 %v1286, %v1282
    %v1603 = vpack.c.b16 %v1287, %v1283
    %v1604 = vpack.c.b16 %v1288, %v1284
    %v1605 = vpack.c.b16 %v1293, %v1289
    %v1606 = vpack.c.b16 %v1294, %v1290
    %v1607 = vpack.c.b16 %v1295, %v1291
    %v1608 = vpack.c.b16 %v1296, %v1292
    %v1609 = vpack.c.b16 %v1301, %v1297
    %v1610 = vpack.c.b16 %v1302, %v1298
    %v1611 = vpack.c.b16 %v1303, %v1299
    %v1612 = vpack.c.b16 %v1304, %v1300
    %v1613 = vpack.c.b16 %v1309, %v1305
    %v1614 = vpack.c.b16 %v1310, %v1306
    %v1615 = vpack.c.b16 %v1311, %v1307
    %v1616 = vpack.c.b16 %v1312, %v1308
    %v1617 = vpack.c.b16 %v1317, %v1313
    %v1618 = vpack.c.b16 %v1318, %v1314
    %v1619 = vpack.c.b16 %v1319, %v1315
    %v1620 = vpack.c.b16 %v1320, %v1316
    %v1621 = vpack.c.b16 %v1325, %v1321
    %v1622 = vpack.c.b16 %v1326, %v1322
    %v1623 = vpack.c.b16 %v1327, %v1323
    %v1624 = vpack.c.b16 %v1328, %v1324
    %v1625 = vpack.c.b16 %v1333, %v1329
    %v1626 = vpack.c.b16 %v1334, %v1330
    %v1627 = vpack.c.b16 %v1335, %v1331
    %v1628 = vpack.c.b16 %v1336, %v1332
    %v1629 = vpack.c.b16 %v1341, %v1337
    %v1630 = vpack.c.b16 %v1342, %v1338
    %v1631 = vpack.c.b16 %v1343, %v1339
    %v1632 = vpack.c.b16 %v1344, %v1340
    %v1633 = vpack.c.b16 %v1349, %v1345
    %v1634 = vpack.c.b16 %v1350, %v1346
    %v1635 = vpack.c.b16 %v1351, %v1347
    %v1636 = vpack.c.b16 %v1352, %v1348
    %v1637 = vpack.c.b16 %v1357, %v1353
    %v1638 = vpack.c.b16 %v1358, %v1354
    %v1639 = vpack.c.b16 %v1359, %v1355
    %v1640 = vpack.c.b16 %v1360, %v1356
    %v1641 = vpack.c.b16 %v1365, %v1361
    %v1642 = vpack.c.b16 %v1366, %v1362
    %v1643 = vpack.c.b16 %v1367, %v1363
    %v1644 = vpack.c.b16 %v1368, %v1364
    %v1645 = vpack.c.b16 %v1373, %v1369
    %v1646 = vpack.c.b16 %v1374, %v1370
    %v1647 = vpack.c.b16 %v1375, %v1371
    %v1648 = vpack.c.b16 %v1376, %v1372
    %v1649 = vpack.c.b16 %v1381, %v1377
    %v1650 = vpack.c.b16 %v1382, %v1378
    %v1651 = vpack.c.b16 %v1383, %v1379
    %v1652 = vpack.c.b16 %v1384, %v1380
    %v1653 = vpack.c.b16 %v1389, %v1385
    %v1654 = vpack.c.b16 %v1390, %v1386
    %v1655 = vpack.c.b16 %v1391, %v1387
    %v1656 = vpack.c.b16 %v1392, %v1388
    %v1657 = vpack.c.b16 %v1397, %v1393
    %v1658 = vpack.c.b16 %v1398, %v1394
    %v1659 = vpack.c.b16 %v1399, %v1395
    %v1660 = vpack.c.b16 %v1400, %v1396
    %v1661 = vpack.c.b16 %v1405, %v1401
    %v1662 = vpack.c.b16 %v1406, %v1402
    %v1663 = vpack.c.b16 %v1407, %v1403
    %v1664 = vpack.c.b16 %v1408, %v1404
    %1921 = vmatpush.bf16.msra.mxu0 %v1437
    %1922 = vmatpush.bf16.msra.mxu0 %v1433
    %1923 = vmatpush.bf16.msra.mxu0 %v1429
    %1924 = vmatpush.bf16.msra.mxu0 %v1425
    %1925 = vmatpush.bf16.msra.mxu0 %v1421
    %1926 = vmatpush.bf16.msra.mxu0 %v1417
    %1927 = vmatpush.bf16.msra.mxu0 %v1413
    %1928 = vmatpush.bf16.msra.mxu0 %v1409
    %1929 = vmatmul.bf16.gmra.mxu0 %v367
    %v1930 = vpop.f32.mrf.mxu0
    %v1931 = vadd.f32 %v633, %v1930
    %v1932 = vpop.f32.mrf.mxu0
    %v1933 = vadd.f32 %v633, %v1932
    %1934 = vdwg.mxu0
    %1935 = vmatpush.bf16.msra.mxu0 %v1469
    %1936 = vmatpush.bf16.msra.mxu0 %v1465
    %1937 = vmatpush.bf16.msra.mxu0 %v1461
    %1938 = vmatpush.bf16.msra.mxu0 %v1457
    %1939 = vmatpush.bf16.msra.mxu0 %v1453
    %1940 = vmatpush.bf16.msra.mxu0 %v1449
    %1941 = vmatpush.bf16.msra.mxu0 %v1445
    %1942 = vmatpush.bf16.msra.mxu0 %v1441
    %1943 = vmatmul.bf16.gmra.mxu0 %v368
    %v1944 = vpop.f32.mrf.mxu0
    %v1945 = vadd.f32 %v1931, %v1944
    %v1946 = vpop.f32.mrf.mxu0
    %v1947 = vadd.f32 %v1933, %v1946
    %1948 = vdwg.mxu0
    %1949 = vmatpush.bf16.msra.mxu0 %v1501
    %1950 = vmatpush.bf16.msra.mxu0 %v1497
    %1951 = vmatpush.bf16.msra.mxu0 %v1493
    %1952 = vmatpush.bf16.msra.mxu0 %v1489
    %1953 = vmatpush.bf16.msra.mxu0 %v1485
    %1954 = vmatpush.bf16.msra.mxu0 %v1481
    %1955 = vmatpush.bf16.msra.mxu0 %v1477
    %1956 = vmatpush.bf16.msra.mxu0 %v1473
    %1957 = vmatmul.bf16.gmra.mxu0 %v369
    %v1958 = vpop.f32.mrf.mxu0
    %v1959 = vadd.f32 %v1945, %v1958
    %v1960 = vpop.f32.mrf.mxu0
    %v1961 = vadd.f32 %v1947, %v1960
    %1962 = vdwg.mxu0
    %1963 = vmatpush.bf16.msra.mxu0 %v1533
    %1964 = vmatpush.bf16.msra.mxu0 %v1529
    %1965 = vmatpush.bf16.msra.mxu0 %v1525
    %1966 = vmatpush.bf16.msra.mxu0 %v1521
    %1967 = vmatpush.bf16.msra.mxu0 %v1517
    %1968 = vmatpush.bf16.msra.mxu0 %v1513
    %1969 = vmatpush.bf16.msra.mxu0 %v1509
    %1970 = vmatpush.bf16.msra.mxu0 %v1505
    %1971 = vmatmul.bf16.gmra.mxu0 %v370
    %v1972 = vpop.f32.mrf.mxu0
    %v1973 = vadd.f32 %v1959, %v1972
    %v1974 = vpop.f32.mrf.mxu0
    %v1975 = vadd.f32 %v1961, %v1974
    %1976 = vdwg.mxu0
    %1977 = vmatpush.bf16.msra.mxu0 %v1565
    %1978 = vmatpush.bf16.msra.mxu0 %v1561
    %1979 = vmatpush.bf16.msra.mxu0 %v1557
    %1980 = vmatpush.bf16.msra.mxu0 %v1553
    %1981 = vmatpush.bf16.msra.mxu0 %v1549
    %1982 = vmatpush.bf16.msra.mxu0 %v1545
    %1983 = vmatpush.bf16.msra.mxu0 %v1541
    %1984 = vmatpush.bf16.msra.mxu0 %v1537
    %1985 = vmatmul.bf16.gmra.mxu0 %v371
    %v1986 = vpop.f32.mrf.mxu0
    %v1987 = vadd.f32 %v1973, %v1986
    %v1988 = vpop.f32.mrf.mxu0
    %v1989 = vadd.f32 %v1975, %v1988
    %1990 = vdwg.mxu0
    %1991 = vmatpush.bf16.msra.mxu0 %v1597
    %1992 = vmatpush.bf16.msra.mxu0 %v1593
    %1993 = vmatpush.bf16.msra.mxu0 %v1589
    %1994 = vmatpush.bf16.msra.mxu0 %v1585
    %1995 = vmatpush.bf16.msra.mxu0 %v1581
    %1996 = vmatpush.bf16.msra.mxu0 %v1577
    %1997 = vmatpush.bf16.msra.mxu0 %v1573
    %1998 = vmatpush.bf16.msra.mxu0 %v1569
    %1999 = vmatmul.bf16.gmra.mxu0 %v372
    %v2000 = vpop.f32.mrf.mxu0
    %v2001 = vadd.f32 %v1987, %v2000
    %v2002 = vpop.f32.mrf.mxu0
    %v2003 = vadd.f32 %v1989, %v2002
    %2004 = vdwg.mxu0
    %2005 = vmatpush.bf16.msra.mxu0 %v1629
    %2006 = vmatpush.bf16.msra.mxu0 %v1625
    %2007 = vmatpush.bf16.msra.mxu0 %v1621
    %2008 = vmatpush.bf16.msra.mxu0 %v1617
    %2009 = vmatpush.bf16.msra.mxu0 %v1613
    %2010 = vmatpush.bf16.msra.mxu0 %v1609
    %2011 = vmatpush.bf16.msra.mxu0 %v1605
    %2012 = vmatpush.bf16.msra.mxu0 %v1601
    %2013 = vmatmul.bf16.gmra.mxu0 %v373
    %v2014 = vpop.f32.mrf.mxu0
    %v2015 = vadd.f32 %v2001, %v2014
    %v2016 = vpop.f32.mrf.mxu0
    %v2017 = vadd.f32 %v2003, %v2016
    %2018 = vdwg.mxu0
    %2019 = vmatpush.bf16.msra.mxu0 %v1661
    %2020 = vmatpush.bf16.msra.mxu0 %v1657
    %2021 = vmatpush.bf16.msra.mxu0 %v1653
    %2022 = vmatpush.bf16.msra.mxu0 %v1649
    %2023 = vmatpush.bf16.msra.mxu0 %v1645
    %2024 = vmatpush.bf16.msra.mxu0 %v1641
    %2025 = vmatpush.bf16.msra.mxu0 %v1637
    %2026 = vmatpush.bf16.msra.mxu0 %v1633
    %2027 = vmatmul.bf16.gmra.mxu0 %v374
    %v2028 = vpop.f32.mrf.mxu0
    %v2029 = vadd.f32 %v2015, %v2028
    %v2030 = vpop.f32.mrf.mxu0
    %v2031 = vadd.f32 %v2017, %v2030
    %2032 = vdwg.mxu0
    %2033 = vmatpush.bf16.msra.mxu0 %v1438
    %2034 = vmatpush.bf16.msra.mxu0 %v1434
    %2035 = vmatpush.bf16.msra.mxu0 %v1430
    %2036 = vmatpush.bf16.msra.mxu0 %v1426
    %2037 = vmatpush.bf16.msra.mxu0 %v1422
    %2038 = vmatpush.bf16.msra.mxu0 %v1418
    %2039 = vmatpush.bf16.msra.mxu0 %v1414
    %2040 = vmatpush.bf16.msra.mxu0 %v1410
    %2041 = vmatmul.bf16.gmra.mxu0 %v367
    %v2042 = vpop.f32.mrf.mxu0
    %v2043 = vadd.f32 %v634, %v2042
    %v2044 = vpop.f32.mrf.mxu0
    %v2045 = vadd.f32 %v634, %v2044
    %2046 = vdwg.mxu0
    %2047 = vmatpush.bf16.msra.mxu0 %v1470
    %2048 = vmatpush.bf16.msra.mxu0 %v1466
    %2049 = vmatpush.bf16.msra.mxu0 %v1462
    %2050 = vmatpush.bf16.msra.mxu0 %v1458
    %2051 = vmatpush.bf16.msra.mxu0 %v1454
    %2052 = vmatpush.bf16.msra.mxu0 %v1450
    %2053 = vmatpush.bf16.msra.mxu0 %v1446
    %2054 = vmatpush.bf16.msra.mxu0 %v1442
    %2055 = vmatmul.bf16.gmra.mxu0 %v368
    %v2056 = vpop.f32.mrf.mxu0
    %v2057 = vadd.f32 %v2043, %v2056
    %v2058 = vpop.f32.mrf.mxu0
    %v2059 = vadd.f32 %v2045, %v2058
    %2060 = vdwg.mxu0
    %2061 = vmatpush.bf16.msra.mxu0 %v1502
    %2062 = vmatpush.bf16.msra.mxu0 %v1498
    %2063 = vmatpush.bf16.msra.mxu0 %v1494
    %2064 = vmatpush.bf16.msra.mxu0 %v1490
    %2065 = vmatpush.bf16.msra.mxu0 %v1486
    %2066 = vmatpush.bf16.msra.mxu0 %v1482
    %2067 = vmatpush.bf16.msra.mxu0 %v1478
    %2068 = vmatpush.bf16.msra.mxu0 %v1474
    %2069 = vmatmul.bf16.gmra.mxu0 %v369
    %v2070 = vpop.f32.mrf.mxu0
    %v2071 = vadd.f32 %v2057, %v2070
    %v2072 = vpop.f32.mrf.mxu0
    %v2073 = vadd.f32 %v2059, %v2072
    %2074 = vdwg.mxu0
    %2075 = vmatpush.bf16.msra.mxu0 %v1534
    %2076 = vmatpush.bf16.msra.mxu0 %v1530
    %2077 = vmatpush.bf16.msra.mxu0 %v1526
    %2078 = vmatpush.bf16.msra.mxu0 %v1522
    %2079 = vmatpush.bf16.msra.mxu0 %v1518
    %2080 = vmatpush.bf16.msra.mxu0 %v1514
    %2081 = vmatpush.bf16.msra.mxu0 %v1510
    %2082 = vmatpush.bf16.msra.mxu0 %v1506
    %2083 = vmatmul.bf16.gmra.mxu0 %v370
    %v2084 = vpop.f32.mrf.mxu0
    %v2085 = vadd.f32 %v2071, %v2084
    %v2086 = vpop.f32.mrf.mxu0
    %v2087 = vadd.f32 %v2073, %v2086
    %2088 = vdwg.mxu0
    %2089 = vmatpush.bf16.msra.mxu0 %v1566
    %2090 = vmatpush.bf16.msra.mxu0 %v1562
    %2091 = vmatpush.bf16.msra.mxu0 %v1558
    %2092 = vmatpush.bf16.msra.mxu0 %v1554
    %2093 = vmatpush.bf16.msra.mxu0 %v1550
    %2094 = vmatpush.bf16.msra.mxu0 %v1546
    %2095 = vmatpush.bf16.msra.mxu0 %v1542
    %2096 = vmatpush.bf16.msra.mxu0 %v1538
    %2097 = vmatmul.bf16.gmra.mxu0 %v371
    %v2098 = vpop.f32.mrf.mxu0
    %v2099 = vadd.f32 %v2085, %v2098
    %v2100 = vpop.f32.mrf.mxu0
    %v2101 = vadd.f32 %v2087, %v2100
    %2102 = vdwg.mxu0
    %2103 = vmatpush.bf16.msra.mxu0 %v1598
    %2104 = vmatpush.bf16.msra.mxu0 %v1594
    %2105 = vmatpush.bf16.msra.mxu0 %v1590
    %2106 = vmatpush.bf16.msra.mxu0 %v1586
    %2107 = vmatpush.bf16.msra.mxu0 %v1582
    %2108 = vmatpush.bf16.msra.mxu0 %v1578
    %2109 = vmatpush.bf16.msra.mxu0 %v1574
    %2110 = vmatpush.bf16.msra.mxu0 %v1570
    %2111 = vmatmul.bf16.gmra.mxu0 %v372
    %v2112 = vpop.f32.mrf.mxu0
    %v2113 = vadd.f32 %v2099, %v2112
    %v2114 = vpop.f32.mrf.mxu0
    %v2115 = vadd.f32 %v2101, %v2114
    %2116 = vdwg.mxu0
    %2117 = vmatpush.bf16.msra.mxu0 %v1630
    %2118 = vmatpush.bf16.msra.mxu0 %v1626
    %2119 = vmatpush.bf16.msra.mxu0 %v1622
    %2120 = vmatpush.bf16.msra.mxu0 %v1618
    %2121 = vmatpush.bf16.msra.mxu0 %v1614
    %2122 = vmatpush.bf16.msra.mxu0 %v1610
    %2123 = vmatpush.bf16.msra.mxu0 %v1606
    %2124 = vmatpush.bf16.msra.mxu0 %v1602
    %2125 = vmatmul.bf16.gmra.mxu0 %v373
    %v2126 = vpop.f32.mrf.mxu0
    %v2127 = vadd.f32 %v2113, %v2126
    %v2128 = vpop.f32.mrf.mxu0
    %v2129 = vadd.f32 %v2115, %v2128
    %2130 = vdwg.mxu0
    %2131 = vmatpush.bf16.msra.mxu0 %v1662
    %2132 = vmatpush.bf16.msra.mxu0 %v1658
    %2133 = vmatpush.bf16.msra.mxu0 %v1654
    %2134 = vmatpush.bf16.msra.mxu0 %v1650
    %2135 = vmatpush.bf16.msra.mxu0 %v1646
    %2136 = vmatpush.bf16.msra.mxu0 %v1642
    %2137 = vmatpush.bf16.msra.mxu0 %v1638
    %2138 = vmatpush.bf16.msra.mxu0 %v1634
    %2139 = vmatmul.bf16.gmra.mxu0 %v374
    %v2140 = vpop.f32.mrf.mxu0
    %v2141 = vadd.f32 %v2127, %v2140
    %v2142 = vpop.f32.mrf.mxu0
    %v2143 = vadd.f32 %v2129, %v2142
    %2144 = vdwg.mxu0
    %2145 = vmatpush.bf16.msra.mxu0 %v1439
    %2146 = vmatpush.bf16.msra.mxu0 %v1435
    %2147 = vmatpush.bf16.msra.mxu0 %v1431
    %2148 = vmatpush.bf16.msra.mxu0 %v1427
    %2149 = vmatpush.bf16.msra.mxu0 %v1423
    %2150 = vmatpush.bf16.msra.mxu0 %v1419
    %2151 = vmatpush.bf16.msra.mxu0 %v1415
    %2152 = vmatpush.bf16.msra.mxu0 %v1411
    %2153 = vmatmul.bf16.gmra.mxu0 %v367
    %v2154 = vpop.f32.mrf.mxu0
    %v2155 = vadd.f32 %v635, %v2154
    %v2156 = vpop.f32.mrf.mxu0
    %v2157 = vadd.f32 %v635, %v2156
    %2158 = vdwg.mxu0
    %2159 = vmatpush.bf16.msra.mxu0 %v1471
    %2160 = vmatpush.bf16.msra.mxu0 %v1467
    %2161 = vmatpush.bf16.msra.mxu0 %v1463
    %2162 = vmatpush.bf16.msra.mxu0 %v1459
    %2163 = vmatpush.bf16.msra.mxu0 %v1455
    %2164 = vmatpush.bf16.msra.mxu0 %v1451
    %2165 = vmatpush.bf16.msra.mxu0 %v1447
    %2166 = vmatpush.bf16.msra.mxu0 %v1443
    %2167 = vmatmul.bf16.gmra.mxu0 %v368
    %v2168 = vpop.f32.mrf.mxu0
    %v2169 = vadd.f32 %v2155, %v2168
    %v2170 = vpop.f32.mrf.mxu0
    %v2171 = vadd.f32 %v2157, %v2170
    %2172 = vdwg.mxu0
    %2173 = vmatpush.bf16.msra.mxu0 %v1503
    %2174 = vmatpush.bf16.msra.mxu0 %v1499
    %2175 = vmatpush.bf16.msra.mxu0 %v1495
    %2176 = vmatpush.bf16.msra.mxu0 %v1491
    %2177 = vmatpush.bf16.msra.mxu0 %v1487
    %2178 = vmatpush.bf16.msra.mxu0 %v1483
    %2179 = vmatpush.bf16.msra.mxu0 %v1479
    %2180 = vmatpush.bf16.msra.mxu0 %v1475
    %2181 = vmatmul.bf16.gmra.mxu0 %v369
    %v2182 = vpop.f32.mrf.mxu0
    %v2183 = vadd.f32 %v2169, %v2182
    %v2184 = vpop.f32.mrf.mxu0
    %v2185 = vadd.f32 %v2171, %v2184
    %2186 = vdwg.mxu0
    %2187 = vmatpush.bf16.msra.mxu0 %v1535
    %2188 = vmatpush.bf16.msra.mxu0 %v1531
    %2189 = vmatpush.bf16.msra.mxu0 %v1527
    %2190 = vmatpush.bf16.msra.mxu0 %v1523
    %2191 = vmatpush.bf16.msra.mxu0 %v1519
    %2192 = vmatpush.bf16.msra.mxu0 %v1515
    %2193 = vmatpush.bf16.msra.mxu0 %v1511
    %2194 = vmatpush.bf16.msra.mxu0 %v1507
    %2195 = vmatmul.bf16.gmra.mxu0 %v370
    %v2196 = vpop.f32.mrf.mxu0
    %v2197 = vadd.f32 %v2183, %v2196
    %v2198 = vpop.f32.mrf.mxu0
    %v2199 = vadd.f32 %v2185, %v2198
    %2200 = vdwg.mxu0
    %2201 = vmatpush.bf16.msra.mxu0 %v1567
    %2202 = vmatpush.bf16.msra.mxu0 %v1563
    %2203 = vmatpush.bf16.msra.mxu0 %v1559
    %2204 = vmatpush.bf16.msra.mxu0 %v1555
    %2205 = vmatpush.bf16.msra.mxu0 %v1551
    %2206 = vmatpush.bf16.msra.mxu0 %v1547
    %2207 = vmatpush.bf16.msra.mxu0 %v1543
    %2208 = vmatpush.bf16.msra.mxu0 %v1539
    %2209 = vmatmul.bf16.gmra.mxu0 %v371
    %v2210 = vpop.f32.mrf.mxu0
    %v2211 = vadd.f32 %v2197, %v2210
    %v2212 = vpop.f32.mrf.mxu0
    %v2213 = vadd.f32 %v2199, %v2212
    %2214 = vdwg.mxu0
    %2215 = vmatpush.bf16.msra.mxu0 %v1599
    %2216 = vmatpush.bf16.msra.mxu0 %v1595
    %2217 = vmatpush.bf16.msra.mxu0 %v1591
    %2218 = vmatpush.bf16.msra.mxu0 %v1587
    %2219 = vmatpush.bf16.msra.mxu0 %v1583
    %2220 = vmatpush.bf16.msra.mxu0 %v1579
    %2221 = vmatpush.bf16.msra.mxu0 %v1575
    %2222 = vmatpush.bf16.msra.mxu0 %v1571
    %2223 = vmatmul.bf16.gmra.mxu0 %v372
    %v2224 = vpop.f32.mrf.mxu0
    %v2225 = vadd.f32 %v2211, %v2224
    %v2226 = vpop.f32.mrf.mxu0
    %v2227 = vadd.f32 %v2213, %v2226
    %2228 = vdwg.mxu0
    %2229 = vmatpush.bf16.msra.mxu0 %v1631
    %2230 = vmatpush.bf16.msra.mxu0 %v1627
    %2231 = vmatpush.bf16.msra.mxu0 %v1623
    %2232 = vmatpush.bf16.msra.mxu0 %v1619
    %2233 = vmatpush.bf16.msra.mxu0 %v1615
    %2234 = vmatpush.bf16.msra.mxu0 %v1611
    %2235 = vmatpush.bf16.msra.mxu0 %v1607
    %2236 = vmatpush.bf16.msra.mxu0 %v1603
    %2237 = vmatmul.bf16.gmra.mxu0 %v373
    %v2238 = vpop.f32.mrf.mxu0
    %v2239 = vadd.f32 %v2225, %v2238
    %v2240 = vpop.f32.mrf.mxu0
    %v2241 = vadd.f32 %v2227, %v2240
    %2242 = vdwg.mxu0
    %2243 = vmatpush.bf16.msra.mxu0 %v1663
    %2244 = vmatpush.bf16.msra.mxu0 %v1659
    %2245 = vmatpush.bf16.msra.mxu0 %v1655
    %2246 = vmatpush.bf16.msra.mxu0 %v1651
    %2247 = vmatpush.bf16.msra.mxu0 %v1647
    %2248 = vmatpush.bf16.msra.mxu0 %v1643
    %2249 = vmatpush.bf16.msra.mxu0 %v1639
    %2250 = vmatpush.bf16.msra.mxu0 %v1635
    %2251 = vmatmul.bf16.gmra.mxu0 %v374
    %v2252 = vpop.f32.mrf.mxu0
    %v2253 = vadd.f32 %v2239, %v2252
    %v2254 = vpop.f32.mrf.mxu0
    %v2255 = vadd.f32 %v2241, %v2254
    %2256 = vdwg.mxu0
    %2257 = vmatpush.bf16.msra.mxu0 %v1440
    %2258 = vmatpush.bf16.msra.mxu0 %v1436
    %2259 = vmatpush.bf16.msra.mxu0 %v1432
    %2260 = vmatpush.bf16.msra.mxu0 %v1428
    %2261 = vmatpush.bf16.msra.mxu0 %v1424
    %2262 = vmatpush.bf16.msra.mxu0 %v1420
    %2263 = vmatpush.bf16.msra.mxu0 %v1416
    %2264 = vmatpush.bf16.msra.mxu0 %v1412
    %2265 = vmatmul.bf16.gmra.mxu0 %v367
    %v2266 = vpop.f32.mrf.mxu0
    %v2267 = vadd.f32 %v636, %v2266
    %v2268 = vpop.f32.mrf.mxu0
    %v2269 = vadd.f32 %v636, %v2268
    %2270 = vdwg.mxu0
    %2271 = vmatpush.bf16.msra.mxu0 %v1472
    %2272 = vmatpush.bf16.msra.mxu0 %v1468
    %2273 = vmatpush.bf16.msra.mxu0 %v1464
    %2274 = vmatpush.bf16.msra.mxu0 %v1460
    %2275 = vmatpush.bf16.msra.mxu0 %v1456
    %2276 = vmatpush.bf16.msra.mxu0 %v1452
    %2277 = vmatpush.bf16.msra.mxu0 %v1448
    %2278 = vmatpush.bf16.msra.mxu0 %v1444
    %2279 = vmatmul.bf16.gmra.mxu0 %v368
    %v2280 = vpop.f32.mrf.mxu0
    %v2281 = vadd.f32 %v2267, %v2280
    %v2282 = vpop.f32.mrf.mxu0
    %v2283 = vadd.f32 %v2269, %v2282
    %2284 = vdwg.mxu0
    %2285 = vmatpush.bf16.msra.mxu0 %v1504
    %2286 = vmatpush.bf16.msra.mxu0 %v1500
    %2287 = vmatpush.bf16.msra.mxu0 %v1496
    %2288 = vmatpush.bf16.msra.mxu0 %v1492
    %2289 = vmatpush.bf16.msra.mxu0 %v1488
    %2290 = vmatpush.bf16.msra.mxu0 %v1484
    %2291 = vmatpush.bf16.msra.mxu0 %v1480
    %2292 = vmatpush.bf16.msra.mxu0 %v1476
    %2293 = vmatmul.bf16.gmra.mxu0 %v369
    %v2294 = vpop.f32.mrf.mxu0
    %v2295 = vadd.f32 %v2281, %v2294
    %v2296 = vpop.f32.mrf.mxu0
    %v2297 = vadd.f32 %v2283, %v2296
    %2298 = vdwg.mxu0
    %2299 = vmatpush.bf16.msra.mxu0 %v1536
    %2300 = vmatpush.bf16.msra.mxu0 %v1532
    %2301 = vmatpush.bf16.msra.mxu0 %v1528
    %2302 = vmatpush.bf16.msra.mxu0 %v1524
    %2303 = vmatpush.bf16.msra.mxu0 %v1520
    %2304 = vmatpush.bf16.msra.mxu0 %v1516
    %2305 = vmatpush.bf16.msra.mxu0 %v1512
    %2306 = vmatpush.bf16.msra.mxu0 %v1508
    %2307 = vmatmul.bf16.gmra.mxu0 %v370
    %v2308 = vpop.f32.mrf.mxu0
    %v2309 = vadd.f32 %v2295, %v2308
    %v2310 = vpop.f32.mrf.mxu0
    %v2311 = vadd.f32 %v2297, %v2310
    %2312 = vdwg.mxu0
    %2313 = vmatpush.bf16.msra.mxu0 %v1568
    %2314 = vmatpush.bf16.msra.mxu0 %v1564
    %2315 = vmatpush.bf16.msra.mxu0 %v1560
    %2316 = vmatpush.bf16.msra.mxu0 %v1556
    %2317 = vmatpush.bf16.msra.mxu0 %v1552
    %2318 = vmatpush.bf16.msra.mxu0 %v1548
    %2319 = vmatpush.bf16.msra.mxu0 %v1544
    %2320 = vmatpush.bf16.msra.mxu0 %v1540
    %2321 = vmatmul.bf16.gmra.mxu0 %v371
    %v2322 = vpop.f32.mrf.mxu0
    %v2323 = vadd.f32 %v2309, %v2322
    %v2324 = vpop.f32.mrf.mxu0
    %v2325 = vadd.f32 %v2311, %v2324
    %2326 = vdwg.mxu0
    %2327 = vmatpush.bf16.msra.mxu0 %v1600
    %2328 = vmatpush.bf16.msra.mxu0 %v1596
    %2329 = vmatpush.bf16.msra.mxu0 %v1592
    %2330 = vmatpush.bf16.msra.mxu0 %v1588
    %2331 = vmatpush.bf16.msra.mxu0 %v1584
    %2332 = vmatpush.bf16.msra.mxu0 %v1580
    %2333 = vmatpush.bf16.msra.mxu0 %v1576
    %2334 = vmatpush.bf16.msra.mxu0 %v1572
    %2335 = vmatmul.bf16.gmra.mxu0 %v372
    %v2336 = vpop.f32.mrf.mxu0
    %v2337 = vadd.f32 %v2323, %v2336
    %v2338 = vpop.f32.mrf.mxu0
    %v2339 = vadd.f32 %v2325, %v2338
    %2340 = vdwg.mxu0
    %2341 = vmatpush.bf16.msra.mxu0 %v1632
    %2342 = vmatpush.bf16.msra.mxu0 %v1628
    %2343 = vmatpush.bf16.msra.mxu0 %v1624
    %2344 = vmatpush.bf16.msra.mxu0 %v1620
    %2345 = vmatpush.bf16.msra.mxu0 %v1616
    %2346 = vmatpush.bf16.msra.mxu0 %v1612
    %2347 = vmatpush.bf16.msra.mxu0 %v1608
    %2348 = vmatpush.bf16.msra.mxu0 %v1604
    %2349 = vmatmul.bf16.gmra.mxu0 %v373
    %v2350 = vpop.f32.mrf.mxu0
    %v2351 = vadd.f32 %v2337, %v2350
    %v2352 = vpop.f32.mrf.mxu0
    %v2353 = vadd.f32 %v2339, %v2352
    %2354 = vdwg.mxu0
    %2355 = vmatpush.bf16.msra.mxu0 %v1664
    %2356 = vmatpush.bf16.msra.mxu0 %v1660
    %2357 = vmatpush.bf16.msra.mxu0 %v1656
    %2358 = vmatpush.bf16.msra.mxu0 %v1652
    %2359 = vmatpush.bf16.msra.mxu0 %v1648
    %2360 = vmatpush.bf16.msra.mxu0 %v1644
    %2361 = vmatpush.bf16.msra.mxu0 %v1640
    %2362 = vmatpush.bf16.msra.mxu0 %v1636
    %2363 = vmatmul.bf16.gmra.mxu0 %v374
    %v2364 = vpop.f32.mrf.mxu0
    %v2365 = vadd.f32 %v2351, %v2364
    %v2366 = vpop.f32.mrf.mxu0
    %v2367 = vadd.f32 %v2353, %v2366
    %2368 = vdwg.mxu0
    %v2369 = vmax.f32 %v2029, 0.0
    %v2370 = vmax.f32 %v2141, 0.0
    %v2371 = vmax.f32 %v2253, 0.0
    %v2372 = vmax.f32 %v2365, 0.0
    %v2373 = vmax.f32 %v2031, 0.0
    %v2374 = vmax.f32 %v2143, 0.0
    %v2375 = vmax.f32 %v2255, 0.0
    %v2376 = vmax.f32 %v2367, 0.0
    %v2377 = vpack.c.bf16 %v2373, %v2369
    %v2378 = vpack.c.bf16 %v2374, %v2370
    %v2379 = vpack.c.bf16 %v2375, %v2371
    %v2380 = vpack.c.bf16 %v2376, %v2372
    %v2381 = vld [vmem:[#allocation11] sm:$0xf]
    %v2382 = vld [vmem:[#allocation11 + $0x4] sm:$0xf]
    %v2383 = vld [vmem:[#allocation11 + $0x8] sm:$0xf]
    %v2384 = vld [vmem:[#allocation11 + $0xc] sm:$0xf]
    %v2385 = vld [vmem:[#allocation11 + $0x10] sm:$0xf]
    %v2386 = vld [vmem:[#allocation11 + $0x14] sm:$0xf]
    %v2387 = vld [vmem:[#allocation11 + $0x18] sm:$0xf]
    %v2388 = vld [vmem:[#allocation11 + $0x1c] sm:$0xf]
    %v2389 = vld [vmem:[#allocation11 + $0x20] sm:$0xf]
    %v2390 = vld [vmem:[#allocation11 + $0x24] sm:$0xf]
    %v2391 = vld [vmem:[#allocation11 + $0x28] sm:$0xf]
    %v2392 = vld [vmem:[#allocation11 + $0x2c] sm:$0xf]
    %v2393 = vld [vmem:[#allocation11 + $0x30] sm:$0xf]
    %v2394 = vld [vmem:[#allocation11 + $0x34] sm:$0xf]
    %v2395 = vld [vmem:[#allocation11 + $0x38] sm:$0xf]
    %v2396 = vld [vmem:[#allocation11 + $0x3c] sm:$0xf]
    %v2397 = vld [vmem:[#allocation11 + $0x40] sm:$0xf]
    %v2398 = vld [vmem:[#allocation11 + $0x44] sm:$0xf]
    %v2399 = vld [vmem:[#allocation11 + $0x48] sm:$0xf]
    %v2400 = vld [vmem:[#allocation11 + $0x4c] sm:$0xf]
    %v2401 = vld [vmem:[#allocation11 + $0x50] sm:$0xf]
    %v2402 = vld [vmem:[#allocation11 + $0x54] sm:$0xf]
    %v2403 = vld [vmem:[#allocation11 + $0x58] sm:$0xf]
    %v2404 = vld [vmem:[#allocation11 + $0x5c] sm:$0xf]
    %v2405 = vld [vmem:[#allocation11 + $0x60] sm:$0xf]
    %v2406 = vld [vmem:[#allocation11 + $0x64] sm:$0xf]
    %v2407 = vld [vmem:[#allocation11 + $0x68] sm:$0xf]
    %v2408 = vld [vmem:[#allocation11 + $0x6c] sm:$0xf]
    %v2409 = vld [vmem:[#allocation11 + $0x70] sm:$0xf]
    %v2410 = vld [vmem:[#allocation11 + $0x74] sm:$0xf]
    %v2411 = vld [vmem:[#allocation11 + $0x78] sm:$0xf]
    %v2412 = vld [vmem:[#allocation11 + $0x7c] sm:$0xf]
    %v2413 = vld [vmem:[#allocation11 + $0x80] sm:$0xf]
    %v2414 = vld [vmem:[#allocation11 + $0x84] sm:$0xf]
    %v2415 = vld [vmem:[#allocation11 + $0x88] sm:$0xf]
    %v2416 = vld [vmem:[#allocation11 + $0x8c] sm:$0xf]
    %v2417 = vld [vmem:[#allocation11 + $0x90] sm:$0xf]
    %v2418 = vld [vmem:[#allocation11 + $0x94] sm:$0xf]
    %v2419 = vld [vmem:[#allocation11 + $0x98] sm:$0xf]
    %v2420 = vld [vmem:[#allocation11 + $0x9c] sm:$0xf]
    %v2421 = vld [vmem:[#allocation11 + $0xa0] sm:$0xf]
    %v2422 = vld [vmem:[#allocation11 + $0xa4] sm:$0xf]
    %v2423 = vld [vmem:[#allocation11 + $0xa8] sm:$0xf]
    %v2424 = vld [vmem:[#allocation11 + $0xac] sm:$0xf]
    %v2425 = vld [vmem:[#allocation11 + $0xb0] sm:$0xf]
    %v2426 = vld [vmem:[#allocation11 + $0xb4] sm:$0xf]
    %v2427 = vld [vmem:[#allocation11 + $0xb8] sm:$0xf]
    %v2428 = vld [vmem:[#allocation11 + $0xbc] sm:$0xf]
    %v2429 = vld [vmem:[#allocation11 + $0xc0] sm:$0xf]
    %v2430 = vld [vmem:[#allocation11 + $0xc4] sm:$0xf]
    %v2431 = vld [vmem:[#allocation11 + $0xc8] sm:$0xf]
    %v2432 = vld [vmem:[#allocation11 + $0xcc] sm:$0xf]
    %v2433 = vld [vmem:[#allocation11 + $0xd0] sm:$0xf]
    %v2434 = vld [vmem:[#allocation11 + $0xd4] sm:$0xf]
    %v2435 = vld [vmem:[#allocation11 + $0xd8] sm:$0xf]
    %v2436 = vld [vmem:[#allocation11 + $0xdc] sm:$0xf]
    %v2437 = vld [vmem:[#allocation11 + $0xe0] sm:$0xf]
    %v2438 = vld [vmem:[#allocation11 + $0xe4] sm:$0xf]
    %v2439 = vld [vmem:[#allocation11 + $0xe8] sm:$0xf]
    %v2440 = vld [vmem:[#allocation11 + $0xec] sm:$0xf]
    %v2441 = vld [vmem:[#allocation11 + $0xf0] sm:$0xf]
    %v2442 = vld [vmem:[#allocation11 + $0xf4] sm:$0xf]
    %v2443 = vld [vmem:[#allocation11 + $0xf8] sm:$0xf]
    %v2444 = vld [vmem:[#allocation11 + $0xfc] sm:$0xf]
    %v2445 = vld [vmem:[%s6] sm:$0x1]
    %v2447 = vperm.slane %v2445, 0
    %v2513 = vunpack.c.l.b16 %v2381
    %v2514 = vunpack.c.l.b16 %v2382
    %v2515 = vunpack.c.l.b16 %v2383
    %v2516 = vunpack.c.l.b16 %v2384
    %v2517 = vunpack.c.l.b16 %v2385
    %v2518 = vunpack.c.l.b16 %v2386
    %v2519 = vunpack.c.l.b16 %v2387
    %v2520 = vunpack.c.l.b16 %v2388
    %v2521 = vunpack.c.l.b16 %v2389
    %v2522 = vunpack.c.l.b16 %v2390
    %v2523 = vunpack.c.l.b16 %v2391
    %v2524 = vunpack.c.l.b16 %v2392
    %v2525 = vunpack.c.l.b16 %v2393
    %v2526 = vunpack.c.l.b16 %v2394
    %v2527 = vunpack.c.l.b16 %v2395
    %v2528 = vunpack.c.l.b16 %v2396
    %v2529 = vunpack.c.l.b16 %v2397
    %v2530 = vunpack.c.l.b16 %v2398
    %v2531 = vunpack.c.l.b16 %v2399
    %v2532 = vunpack.c.l.b16 %v2400
    %v2533 = vunpack.c.l.b16 %v2401
    %v2534 = vunpack.c.l.b16 %v2402
    %v2535 = vunpack.c.l.b16 %v2403
    %v2536 = vunpack.c.l.b16 %v2404
    %v2537 = vunpack.c.l.b16 %v2405
    %v2538 = vunpack.c.l.b16 %v2406
    %v2539 = vunpack.c.l.b16 %v2407
    %v2540 = vunpack.c.l.b16 %v2408
    %v2541 = vunpack.c.l.b16 %v2409
    %v2542 = vunpack.c.l.b16 %v2410
    %v2543 = vunpack.c.l.b16 %v2411
    %v2544 = vunpack.c.l.b16 %v2412
    %v2545 = vunpack.c.l.b16 %v2413
    %v2546 = vunpack.c.l.b16 %v2414
    %v2547 = vunpack.c.l.b16 %v2415
    %v2548 = vunpack.c.l.b16 %v2416
    %v2549 = vunpack.c.l.b16 %v2417
    %v2550 = vunpack.c.l.b16 %v2418
    %v2551 = vunpack.c.l.b16 %v2419
    %v2552 = vunpack.c.l.b16 %v2420
    %v2553 = vunpack.c.l.b16 %v2421
    %v2554 = vunpack.c.l.b16 %v2422
    %v2555 = vunpack.c.l.b16 %v2423
    %v2556 = vunpack.c.l.b16 %v2424
    %v2557 = vunpack.c.l.b16 %v2425
    %v2558 = vunpack.c.l.b16 %v2426
    %v2559 = vunpack.c.l.b16 %v2427
    %v2560 = vunpack.c.l.b16 %v2428
    %v2561 = vunpack.c.l.b16 %v2429
    %v2562 = vunpack.c.l.b16 %v2430
    %v2563 = vunpack.c.l.b16 %v2431
    %v2564 = vunpack.c.l.b16 %v2432
    %v2565 = vunpack.c.l.b16 %v2433
    %v2566 = vunpack.c.l.b16 %v2434
    %v2567 = vunpack.c.l.b16 %v2435
    %v2568 = vunpack.c.l.b16 %v2436
    %v2569 = vunpack.c.l.b16 %v2437
    %v2570 = vunpack.c.l.b16 %v2438
    %v2571 = vunpack.c.l.b16 %v2439
    %v2572 = vunpack.c.l.b16 %v2440
    %v2573 = vunpack.c.l.b16 %v2441
    %v2574 = vunpack.c.l.b16 %v2442
    %v2575 = vunpack.c.l.b16 %v2443
    %v2576 = vunpack.c.l.b16 %v2444
    %v2577 = vpack.c.b16 %v2514, %v2513
    %v2578 = vpack.c.b16 %v2516, %v2515
    %v2579 = vpack.c.b16 %v2518, %v2517
    %v2580 = vpack.c.b16 %v2520, %v2519
    %v2581 = vpack.c.b16 %v2522, %v2521
    %v2582 = vpack.c.b16 %v2524, %v2523
    %v2583 = vpack.c.b16 %v2526, %v2525
    %v2584 = vpack.c.b16 %v2528, %v2527
    %v2585 = vpack.c.b16 %v2530, %v2529
    %v2586 = vpack.c.b16 %v2532, %v2531
    %v2587 = vpack.c.b16 %v2534, %v2533
    %v2588 = vpack.c.b16 %v2536, %v2535
    %v2589 = vpack.c.b16 %v2538, %v2537
    %v2590 = vpack.c.b16 %v2540, %v2539
    %v2591 = vpack.c.b16 %v2542, %v2541
    %v2592 = vpack.c.b16 %v2544, %v2543
    %v2593 = vpack.c.b16 %v2546, %v2545
    %v2594 = vpack.c.b16 %v2548, %v2547
    %v2595 = vpack.c.b16 %v2550, %v2549
    %v2596 = vpack.c.b16 %v2552, %v2551
    %v2597 = vpack.c.b16 %v2554, %v2553
    %v2598 = vpack.c.b16 %v2556, %v2555
    %v2599 = vpack.c.b16 %v2558, %v2557
    %v2600 = vpack.c.b16 %v2560, %v2559
    %v2601 = vpack.c.b16 %v2562, %v2561
    %v2602 = vpack.c.b16 %v2564, %v2563
    %v2603 = vpack.c.b16 %v2566, %v2565
    %v2604 = vpack.c.b16 %v2568, %v2567
    %v2605 = vpack.c.b16 %v2570, %v2569
    %v2606 = vpack.c.b16 %v2572, %v2571
    %v2607 = vpack.c.b16 %v2574, %v2573
    %v2608 = vpack.c.b16 %v2576, %v2575
    %2641 = vmatpush.bf16.msra.mxu0 %v2584
    %2642 = vmatpush.bf16.msra.mxu0 %v2583
    %2643 = vmatpush.bf16.msra.mxu0 %v2582
    %2644 = vmatpush.bf16.msra.mxu0 %v2581
    %2645 = vmatpush.bf16.msra.mxu0 %v2580
    %2646 = vmatpush.bf16.msra.mxu0 %v2579
    %2647 = vmatpush.bf16.msra.mxu0 %v2578
    %2648 = vmatpush.bf16.msra.mxu0 %v2577
    %2649 = vmatmul.bf16.gmra.mxu0 %v2377
    %v2650 = vpop.f32.mrf.mxu0
    %v2651 = vadd.f32 %v2447, %v2650
    %v2652 = vpop.f32.mrf.mxu0
    %v2653 = vadd.f32 %v2447, %v2652
    %2654 = vdwg.mxu0
    %2655 = vmatpush.bf16.msra.mxu0 %v2592
    %2656 = vmatpush.bf16.msra.mxu0 %v2591
    %2657 = vmatpush.bf16.msra.mxu0 %v2590
    %2658 = vmatpush.bf16.msra.mxu0 %v2589
    %2659 = vmatpush.bf16.msra.mxu0 %v2588
    %2660 = vmatpush.bf16.msra.mxu0 %v2587
    %2661 = vmatpush.bf16.msra.mxu0 %v2586
    %2662 = vmatpush.bf16.msra.mxu0 %v2585
    %2663 = vmatmul.bf16.gmra.mxu0 %v2378
    %v2664 = vpop.f32.mrf.mxu0
    %v2665 = vadd.f32 %v2651, %v2664
    %v2666 = vpop.f32.mrf.mxu0
    %v2667 = vadd.f32 %v2653, %v2666
    %2668 = vdwg.mxu0
    %2669 = vmatpush.bf16.msra.mxu0 %v2600
    %2670 = vmatpush.bf16.msra.mxu0 %v2599
    %2671 = vmatpush.bf16.msra.mxu0 %v2598
    %2672 = vmatpush.bf16.msra.mxu0 %v2597
    %2673 = vmatpush.bf16.msra.mxu0 %v2596
    %2674 = vmatpush.bf16.msra.mxu0 %v2595
    %2675 = vmatpush.bf16.msra.mxu0 %v2594
    %2676 = vmatpush.bf16.msra.mxu0 %v2593
    %2677 = vmatmul.bf16.gmra.mxu0 %v2379
    %v2678 = vpop.f32.mrf.mxu0
    %v2679 = vadd.f32 %v2665, %v2678
    %v2680 = vpop.f32.mrf.mxu0
    %v2681 = vadd.f32 %v2667, %v2680
    %2682 = vdwg.mxu0
    %2683 = vmatpush.bf16.msra.mxu0 %v2608
    %2684 = vmatpush.bf16.msra.mxu0 %v2607
    %2685 = vmatpush.bf16.msra.mxu0 %v2606
    %2686 = vmatpush.bf16.msra.mxu0 %v2605
    %2687 = vmatpush.bf16.msra.mxu0 %v2604
    %2688 = vmatpush.bf16.msra.mxu0 %v2603
    %2689 = vmatpush.bf16.msra.mxu0 %v2602
    %2690 = vmatpush.bf16.msra.mxu0 %v2601
    %2691 = vmatmul.bf16.gmra.mxu0 %v2380
    %v2692 = vpop.f32.mrf.mxu0
    %v2693 = vadd.f32 %v2679, %v2692
    %v2694 = vpop.f32.mrf.mxu0
    %v2695 = vadd.f32 %v2681, %v2694
    %2696 = vdwg.mxu0
    %v2697 = vmax.f32 %v2693, 0.0
    %v2698 = vmax.f32 %v2695, 0.0
    %2699 = vst [vmem:[#allocation13] sm:$0xff] %v2697
    %2700 = vst [vmem:[#allocation13 + $0x8] sm:$0xff] %v2698
    // Predicated region
    $region54: #{tpu_custom_call.1} parent=1 // pred_check
      _
    $region55: #{tpu_custom_call.1} parent=1 // pred_check_branch
      %2702 = sbr.rel (0) target = $region57
    $region56: #{tpu_custom_call.1} parent=1 // pred_region
      %2704 = vsyncadd [#allocation4], 0
      %s2705 = sshll.u32 [#allocation13], 4
      %s2706 = int_to_ptr.vmem [resolvable:$true] %s2705
      %s2707 = sshll.u32 %s7, 4
      %s2708 = int_to_ptr.hbm [resolvable:$true] %s2707
      %2713 = dma.vmem_to_hbm [thread:$0]  %s2706, 256, %s2708, [#allocation4], 128, 128, 8
    $region57: #{tpu_custom_call.1} parent=1 // pred_fallthru
      _
    // Predicated region
    $region58: #{tpu_custom_call.1} parent=1 // pred_check
      _
    $region59: #{tpu_custom_call.1} parent=1 // pred_check_branch
      %2715 = sbr.rel (0) target = $region61
    $region60: #{tpu_custom_call.1} parent=1 // pred_region
      %2717 = dma.done [#allocation4], 256
    $region61: #{tpu_custom_call.1} parent=1 // pred_fallthru
      _
    %2718 = vsyncpa [#allocation3], 1
    %2719 = vsyncpa [#allocation6], 1
    %2720 = vsyncpa [#allocation9], 1
    %2721 = vsyncpa [#allocation12], 1
    %2722 = vsyncpa [#allocation4], 1

</llo_original>
